<compile_context>
chip_gen: v7x
topology: tpu7x:2x2x1
jax: 0.10.0
libtpu: 0.0.40
codegen_flags: <defaults>
</compile_context>

<pallas_src>
import numpy as np
import jax
import jax.numpy as jnp
from jax.experimental import pallas as pl
from jax.experimental.pallas import tpu as pltpu

# ---------------- model hyper-parameters (small, consistent with module) ----
BZ = 2
LEN = 8
D_MODEL = 32
NB_HEADS = 4
D_HEAD = 8
D_FF = 64
LN_EPS = 1e-6
NEG_INF = -1e9

R_TOKENS = BZ * LEN                      # 16 flattened (batch, position) rows
HD = NB_HEADS * D_HEAD                   # 32

# -------- fused input-projection column layout: [ q | k | v | fc1 | fc2 ] ----
_Q0 = 0
_K0 = HD                                 # 32
_V0 = 2 * HD                             # 64
_F1 = 3 * HD                             # 96
_F2 = 3 * HD + D_MODEL                   # 128
_IN_W = 3 * HD + 2 * D_MODEL             # 160

# -------- fused FFN slab column layout: [ w1 | ff_fc1 | ff_fc2 ] -------------
_MH_W = D_FF + 2 * D_MODEL               # 128

# -------- row-indexed small-vector table (6, D_MODEL) ------------------------
_R_BO, _R_B2, _R_LN1G, _R_LN1B, _R_LN2G, _R_LN2B = range(6)


def _layer_norm(x, g, b):
    mu = jnp.mean(x, axis=-1, keepdims=True)
    var = jnp.mean((x - mu) ** 2, axis=-1, keepdims=True)
    return (x - mu) * jax.lax.rsqrt(var + LN_EPS) * g + b


# ---------------- fused encoder-layer kernel (whole batch, one step) ---------
def encoder_layer_kernel(h_ref, mask_ref, seqm_ref,
                         w_in_ref, b_in_ref, wo_ref,
                         w_mh_ref, b_mh_ref, w2_ref, vb_ref,
                         out_ref):
    h = h_ref[...]                       # (R, D)   flattened (batch*len, d_model)
    add_mask = mask_ref[...]             # (R, R)   0.0 valid / NEG_INF (pad or cross-batch)
    seqm = seqm_ref[...]                 # (R, 1)
    vb = vb_ref[...]                     # (6, D)   row-indexed bias/LN table

    # ---- single fused input projection: [q | k | v | gate_fc1 | gate_fc2] ---
    big = jnp.dot(h, w_in_ref[...], preferred_element_type=jnp.float32) + b_in_ref[...]

    def heads(base):                     # (R, H*dh) columns -> (H, R, dh)
        return jnp.stack(
            [big[:, base + i * D_HEAD: base + (i + 1) * D_HEAD]
             for i in range(NB_HEADS)], axis=0)

    qh = heads(_Q0) * (1.0 / D_HEAD ** 0.5)          # fold the 1/sqrt(dk) scale into q
    kh = heads(_K0)
    vh = heads(_V0)
    g_att = jax.nn.sigmoid(big[:, _F1:_F2]) * big[:, _F2:_IN_W]

    # ---- attention, batched over heads; mask removes cross-batch + padding --
    s = jax.lax.dot_general(qh, kh, (((2,), (2,)), ((0,), (0,))),
                            preferred_element_type=jnp.float32)      # (H, R, R)
    s = s + add_mask
    s = s - jnp.max(s, axis=-1, keepdims=True)
    e = jnp.exp(s)
    p_att = e / jnp.sum(e, axis=-1, keepdims=True)   # exact divide (no approx recip)
    att = jax.lax.dot_general(p_att, vh, (((2,), (1,)), ((0,), (0,))),
                              preferred_element_type=jnp.float32)    # (H, R, dh)

    # ---- concat heads -> single out-projection matmul -----------------------
    cat = jnp.concatenate([att[i] for i in range(NB_HEADS)], axis=-1)  # (R, H*dh)
    att_out = jnp.dot(cat, wo_ref[...],
                      preferred_element_type=jnp.float32) + vb[_R_BO:_R_BO + 1]

    x = h + att_out + g_att
    mh = _layer_norm(x, vb[_R_LN1G:_R_LN1G + 1], vb[_R_LN1B:_R_LN1B + 1]) * seqm

    # ---- position-wise FFN + GLU gate: fused [w1 | ff_fc1 | ff_fc2] matmul ---
    mm = jnp.dot(mh, w_mh_ref[...], preferred_element_type=jnp.float32) + b_mh_ref[...]
    hid = jnp.maximum(mm[:, 0:D_FF], 0.0)
    g_ff = jax.nn.sigmoid(mm[:, D_FF:D_FF + D_MODEL]) \
        * mm[:, D_FF + D_MODEL:D_FF + 2 * D_MODEL]
    ff = jnp.dot(hid, w2_ref[...],
                 preferred_element_type=jnp.float32) + vb[_R_B2:_R_B2 + 1]

    z = mh + ff + g_ff
    out = _layer_norm(z, vb[_R_LN2G:_R_LN2G + 1], vb[_R_LN2B:_R_LN2B + 1]) * seqm
    out_ref[...] = out


# ---------------- pallas_call wrapper ----------------------------------------
@jax.jit
def encoder_layer(enc_in, att_mask_bool, seq_mask, pk):
    # Flatten batch x len into one row axis (free XLA reshape, outside the kernel).
    h2 = enc_in.reshape(R_TOKENS, D_MODEL)
    seqm2 = seq_mask.astype(jnp.float32).reshape(R_TOKENS, 1)

    # Additive mask over the flattened token axis: NEG_INF for padded keys and
    # for (query, key) pairs belonging to different batch elements.
    bid = jnp.repeat(jnp.arange(BZ, dtype=jnp.int32), LEN)            # (R,)
    keypad = att_mask_bool.reshape(R_TOKENS)                          # (R,)
    blocked = (bid[:, None] != bid[None, :]) | keypad[None, :]        # (R, R)
    add_mask = blocked.astype(jnp.float32) * NEG_INF

    vmem = pl.BlockSpec(memory_space=pltpu.MemorySpace.VMEM)
    out2 = pl.pallas_call(
        encoder_layer_kernel,
        out_shape=jax.ShapeDtypeStruct((R_TOKENS, D_MODEL), jnp.float32),
        in_specs=[vmem] * 10,
        out_specs=vmem,
    )(h2, add_mask, seqm2,
      pk["w_in"], pk["b_in"], pk["wo"],
      pk["w_mh"], pk["b_mh"], pk["w2"], pk["vbias"])
    return out2.reshape(BZ, LEN, D_MODEL)


# ---------------- parameter packing (canonical -> kernel layout) -------------
def pack_params(p):
    wk = p["wkv"][:, :HD]
    wv = p["wkv"][:, HD:]
    bk = p["bkv"][:HD]
    bv = p["bkv"][HD:]

    # Fused input slab: [ q | k | v | att_fc1 | att_fc2 ]  -> (D_MODEL, 160)
    w_in = jnp.concatenate([p["wq"], wk, wv, p["att_wf1"], p["att_wf2"]], axis=1)
    b_in = jnp.concatenate([p["bq"], bk, bv, p["att_bf1"], p["att_bf2"]]).reshape(1, _IN_W)

    # Fused FFN slab: [ w1 | ff_fc1 | ff_fc2 ]  -> (D_MODEL, 128)
    w_mh = jnp.concatenate([p["w1"], p["ff_wf1"], p["ff_wf2"]], axis=1)
    b_mh = jnp.concatenate([p["b1"], p["ff_bf1"], p["ff_bf2"]]).reshape(1, _MH_W)

    # Row-indexed small vectors (sublane access in-kernel).
    vbias = jnp.stack([p["bo"], p["b2"],
                       p["att_ln_g"], p["att_ln_b"],
                       p["ff_ln_g"], p["ff_ln_b"]], axis=0)           # (6, D_MODEL)

    return {"w_in": w_in, "b_in": b_in, "wo": p["wo"],
            "w_mh": w_mh, "b_mh": b_mh, "w2": p["w2"], "vbias": vbias}


# ---------------- pure-JAX reference (canonical params) ----------------------
def reference(enc_in, att_mask_b, seq_mask_f, p):
    h = enc_in
    q = h @ p["wq"] + p["bq"]
    kv = h @ p["wkv"] + p["bkv"]
    k, v = kv[..., :HD], kv[..., HD:]

    def split(x):  # (B, L, H*dh) -> (B, H, L, dh)
        return x.reshape(BZ, LEN, NB_HEADS, D_HEAD).transpose(0, 2, 1, 3)

    qh, kh, vh = split(q), split(k), split(v)
    s = jnp.einsum("bhqd,bhkd->bhqk", qh, kh) * (1.0 / D_HEAD ** 0.5)
    s = jnp.where(att_mask_b[:, None, None, :], NEG_INF, s)
    pw = jax.nn.softmax(s, axis=-1)
    att = jnp.einsum("bhqk,bhkd->bhqd", pw, vh)
    att = att.transpose(0, 2, 1, 3).reshape(BZ, LEN, HD)
    att_out = att @ p["wo"] + p["bo"]
    g = jax.nn.sigmoid(h @ p["att_wf1"] + p["att_bf1"]) * (h @ p["att_wf2"] + p["att_bf2"])
    x = h + att_out + g
    mu = x.mean(-1, keepdims=True)
    var = ((x - mu) ** 2).mean(-1, keepdims=True)
    mh = (x - mu) / jnp.sqrt(var + LN_EPS) * p["att_ln_g"] + p["att_ln_b"]
    mh = mh * seq_mask_f

    ff = jnp.maximum(mh @ p["w1"] + p["b1"], 0.0) @ p["w2"] + p["b2"]
    g2 = jax.nn.sigmoid(mh @ p["ff_wf1"] + p["ff_bf1"]) * (mh @ p["ff_wf2"] + p["ff_bf2"])
    z = mh + ff + g2
    mu = z.mean(-1, keepdims=True)
    var = ((z - mu) ** 2).mean(-1, keepdims=True)
    out = (z - mu) / jnp.sqrt(var + LN_EPS) * p["ff_ln_g"] + p["ff_ln_b"]
    return out * seq_mask_f


# ---------------- parameter init (canonical layout) ---------------------------
def init_params(key):
    def dense(k, fan_in, fan_out, gain=1.0):
        lim = gain * np.sqrt(6.0 / (fan_in + fan_out))
        return jax.random.uniform(k, (fan_in, fan_out), jnp.float32, -lim, lim)

    ks = jax.random.split(key, 9)
    return {
        "wq": dense(ks[0], D_MODEL, HD, gain=1 / 2 ** 0.5),
        "bq": jnp.zeros((HD,), jnp.float32),
        "wkv": dense(ks[1], D_MODEL, 2 * HD, gain=1 / 2 ** 0.5),
        "bkv": jnp.zeros((2 * HD,), jnp.float32),
        "wo": dense(ks[2], HD, D_MODEL),
        "bo": jnp.zeros((D_MODEL,), jnp.float32),
        "att_wf1": dense(ks[3], D_MODEL, D_MODEL),
        "att_bf1": 0.01 * jnp.ones((D_MODEL,), jnp.float32),
        "att_wf2": dense(ks[4], D_MODEL, D_MODEL),
        "att_bf2": 0.02 * jnp.ones((D_MODEL,), jnp.float32),
        "att_ln_g": jnp.ones((D_MODEL,), jnp.float32),
        "att_ln_b": jnp.zeros((D_MODEL,), jnp.float32),
        "w1": dense(ks[5], D_MODEL, D_FF),
        "b1": 0.01 * jnp.ones((D_FF,), jnp.float32),
        "w2": dense(ks[6], D_FF, D_MODEL),
        "b2": 0.02 * jnp.ones((D_MODEL,), jnp.float32),
        "ff_wf1": dense(ks[7], D_MODEL, D_MODEL),
        "ff_bf1": 0.01 * jnp.ones((D_MODEL,), jnp.float32),
        "ff_wf2": dense(ks[8], D_MODEL, D_MODEL),
        "ff_bf2": 0.02 * jnp.ones((D_MODEL,), jnp.float32),
        "ff_ln_g": jnp.ones((D_MODEL,), jnp.float32),
        "ff_ln_b": jnp.zeros((D_MODEL,), jnp.float32),
    }


# ---------------- main --------------------------------------------------------
if __name__ == "__main__":
    key = jax.random.PRNGKey(0)
    k_h, k_p = jax.random.split(key)

    enc_in = jax.random.normal(k_h, (BZ, LEN, D_MODEL), jnp.float32)

    # attention padding mask: True == padded position (last 2 tokens of batch 1)
    att_mask_b = jnp.zeros((BZ, LEN), bool).at[1, LEN - 2:].set(True)
    # seq mask: 1.0 for valid positions, 0.0 for padded
    seq_mask_f = (~att_mask_b).astype(jnp.float32).reshape(BZ, LEN, 1)

    canon = init_params(k_p)
    packed = pack_params(canon)          # one-time packing outside the hot path

    out = encoder_layer(enc_in, att_mask_b, seq_mask_f, packed)
    out = jax.block_until_ready(out)

    ref = reference(enc_in, att_mask_b, seq_mask_f, canon)
    np.testing.assert_allclose(np.asarray(out), np.asarray(ref), rtol=1e-3, atol=1e-3)

    print("KERNEL_OK")
</pallas_src>

<mosaic_0001>
module attributes {stable_mosaic.version = 11 : i64} {
  func.func @encoder_layer_kernel(%arg0: memref<16x32xf32, #tpu.memory_space<vmem>>, %arg1: memref<16x16xf32, #tpu.memory_space<vmem>>, %arg2: memref<16x1xf32, #tpu.memory_space<vmem>>, %arg3: memref<32x160xf32, #tpu.memory_space<vmem>>, %arg4: memref<1x160xf32, #tpu.memory_space<vmem>>, %arg5: memref<32x32xf32, #tpu.memory_space<vmem>>, %arg6: memref<32x128xf32, #tpu.memory_space<vmem>>, %arg7: memref<1x128xf32, #tpu.memory_space<vmem>>, %arg8: memref<64x32xf32, #tpu.memory_space<vmem>>, %arg9: memref<6x32xf32, #tpu.memory_space<vmem>>, %arg10: memref<16x32xf32, #tpu.memory_space<vmem>>) attributes {dimension_semantics = [], scalar_prefetch = 0 : i64, scratch_operands = 0 : i64, tpu.core_type = #tpu.core_type<tc>} {
    %c0 = arith.constant 0 : index
    %c0_0 = arith.constant 0 : index
    %0 = vector.load %arg0[%c0, %c0_0] : memref<16x32xf32, #tpu.memory_space<vmem>>, vector<16x32xf32>
    %c0_1 = arith.constant 0 : index
    %c0_2 = arith.constant 0 : index
    %1 = vector.load %arg1[%c0_1, %c0_2] : memref<16x16xf32, #tpu.memory_space<vmem>>, vector<16x16xf32>
    %c0_3 = arith.constant 0 : index
    %c0_4 = arith.constant 0 : index
    %2 = vector.load %arg2[%c0_3, %c0_4] : memref<16x1xf32, #tpu.memory_space<vmem>>, vector<16x1xf32>
    %c0_5 = arith.constant 0 : index
    %c0_6 = arith.constant 0 : index
    %3 = vector.load %arg9[%c0_5, %c0_6] : memref<6x32xf32, #tpu.memory_space<vmem>>, vector<6x32xf32>
    %c0_7 = arith.constant 0 : index
    %c0_8 = arith.constant 0 : index
    %4 = vector.load %arg3[%c0_7, %c0_8] : memref<32x160xf32, #tpu.memory_space<vmem>>, vector<32x160xf32>
    %cst = arith.constant dense<0.000000e+00> : vector<16x160xf32>
    %5 = tpu.matmul %0, %4, %cst {dimension_numbers = #tpu.dot_dimension_numbers<[1], [0], [0], [1], [0, 0, 1, 1], [], []>} : vector<16x32xf32>, vector<32x160xf32>, vector<16x160xf32> -> vector<16x160xf32>
    %c0_9 = arith.constant 0 : index
    %c0_10 = arith.constant 0 : index
    %6 = vector.load %arg4[%c0_9, %c0_10] : memref<1x160xf32, #tpu.memory_space<vmem>>, vector<1x160xf32>
    %7 = vector.broadcast %6 : vector<1x160xf32> to vector<16x160xf32>
    %8 = arith.addf %5, %7 : vector<16x160xf32>
    %9 = vector.extract_strided_slice %8 {offsets = [0, 0], sizes = [16, 8], strides = [1, 1]} : vector<16x160xf32> to vector<16x8xf32>
    %10 = vector.extract_strided_slice %8 {offsets = [0, 8], sizes = [16, 8], strides = [1, 1]} : vector<16x160xf32> to vector<16x8xf32>
    %11 = vector.extract_strided_slice %8 {offsets = [0, 16], sizes = [16, 8], strides = [1, 1]} : vector<16x160xf32> to vector<16x8xf32>
    %12 = vector.extract_strided_slice %8 {offsets = [0, 24], sizes = [16, 8], strides = [1, 1]} : vector<16x160xf32> to vector<16x8xf32>
    %13 = vector.shape_cast %9 : vector<16x8xf32> to vector<1x16x8xf32>
    %14 = vector.shape_cast %10 : vector<16x8xf32> to vector<1x16x8xf32>
    %15 = vector.shape_cast %11 : vector<16x8xf32> to vector<1x16x8xf32>
    %16 = vector.shape_cast %12 : vector<16x8xf32> to vector<1x16x8xf32>
    %17 = tpu.concatenate %13, %14, %15, %16 in 0 : vector<1x16x8xf32>, vector<1x16x8xf32>, vector<1x16x8xf32>, vector<1x16x8xf32> -> vector<4x16x8xf32>
    %cst_11 = arith.constant 0.353553385 : f32
    %18 = vector.broadcast %cst_11 : f32 to vector<4x16x8xf32>
    %19 = arith.mulf %17, %18 : vector<4x16x8xf32>
    %20 = vector.extract_strided_slice %8 {offsets = [0, 32], sizes = [16, 8], strides = [1, 1]} : vector<16x160xf32> to vector<16x8xf32>
    %21 = vector.extract_strided_slice %8 {offsets = [0, 40], sizes = [16, 8], strides = [1, 1]} : vector<16x160xf32> to vector<16x8xf32>
    %22 = vector.extract_strided_slice %8 {offsets = [0, 48], sizes = [16, 8], strides = [1, 1]} : vector<16x160xf32> to vector<16x8xf32>
    %23 = vector.extract_strided_slice %8 {offsets = [0, 56], sizes = [16, 8], strides = [1, 1]} : vector<16x160xf32> to vector<16x8xf32>
    %24 = vector.shape_cast %20 : vector<16x8xf32> to vector<1x16x8xf32>
    %25 = vector.shape_cast %21 : vector<16x8xf32> to vector<1x16x8xf32>
    %26 = vector.shape_cast %22 : vector<16x8xf32> to vector<1x16x8xf32>
    %27 = vector.shape_cast %23 : vector<16x8xf32> to vector<1x16x8xf32>
    %28 = tpu.concatenate %24, %25, %26, %27 in 0 : vector<1x16x8xf32>, vector<1x16x8xf32>, vector<1x16x8xf32>, vector<1x16x8xf32> -> vector<4x16x8xf32>
    %29 = vector.extract_strided_slice %8 {offsets = [0, 64], sizes = [16, 8], strides = [1, 1]} : vector<16x160xf32> to vector<16x8xf32>
    %30 = vector.extract_strided_slice %8 {offsets = [0, 72], sizes = [16, 8], strides = [1, 1]} : vector<16x160xf32> to vector<16x8xf32>
    %31 = vector.extract_strided_slice %8 {offsets = [0, 80], sizes = [16, 8], strides = [1, 1]} : vector<16x160xf32> to vector<16x8xf32>
    %32 = vector.extract_strided_slice %8 {offsets = [0, 88], sizes = [16, 8], strides = [1, 1]} : vector<16x160xf32> to vector<16x8xf32>
    %33 = vector.shape_cast %29 : vector<16x8xf32> to vector<1x16x8xf32>
    %34 = vector.shape_cast %30 : vector<16x8xf32> to vector<1x16x8xf32>
    %35 = vector.shape_cast %31 : vector<16x8xf32> to vector<1x16x8xf32>
    %36 = vector.shape_cast %32 : vector<16x8xf32> to vector<1x16x8xf32>
    %37 = tpu.concatenate %33, %34, %35, %36 in 0 : vector<1x16x8xf32>, vector<1x16x8xf32>, vector<1x16x8xf32>, vector<1x16x8xf32> -> vector<4x16x8xf32>
    %38 = vector.extract_strided_slice %8 {offsets = [0, 96], sizes = [16, 32], strides = [1, 1]} : vector<16x160xf32> to vector<16x32xf32>
    %39 = arith.negf %38 : vector<16x32xf32>
    %40 = math.exp %39 : vector<16x32xf32>
    %cst_12 = arith.constant 1.000000e+00 : f32
    %41 = vector.broadcast %cst_12 : f32 to vector<16x32xf32>
    %42 = arith.addf %41, %40 : vector<16x32xf32>
    %43 = arith.divf %41, %42 : vector<16x32xf32>
    %44 = vector.extract_strided_slice %8 {offsets = [0, 128], sizes = [16, 32], strides = [1, 1]} : vector<16x160xf32> to vector<16x32xf32>
    %45 = arith.mulf %43, %44 : vector<16x32xf32>
    %cst_13 = arith.constant dense<0.000000e+00> : vector<4x16x16xf32>
    %46 = tpu.matmul %19, %28, %cst_13 {dimension_numbers = #tpu.dot_dimension_numbers<[2], [2], [1], [1], [0, 0, 0, 1, 1, 1], [0], [0]>} : vector<4x16x8xf32>, vector<4x16x8xf32>, vector<4x16x16xf32> -> vector<4x16x16xf32>
    %47 = vector.shape_cast %1 : vector<16x16xf32> to vector<1x16x16xf32>
    %48 = vector.broadcast %47 : vector<1x16x16xf32> to vector<4x16x16xf32>
    %49 = arith.addf %46, %48 : vector<4x16x16xf32>
    %cst_14 = arith.constant dense<0xFF800000> : vector<4x16xf32>
    %50 = vector.multi_reduction <maximumf>, %49, %cst_14 [2] : vector<4x16x16xf32> to vector<4x16xf32>
    %51 = vector.shape_cast %50 : vector<4x16xf32> to vector<4x16x1xf32>
    %52 = vector.broadcast %51 : vector<4x16x1xf32> to vector<4x16x16xf32>
    %53 = arith.subf %49, %52 : vector<4x16x16xf32>
    %54 = math.exp %53 : vector<4x16x16xf32>
    %cst_15 = arith.constant dense<0.000000e+00> : vector<4x16xf32>
    %55 = vector.multi_reduction <add>, %54, %cst_15 [2] : vector<4x16x16xf32> to vector<4x16xf32>
    %56 = vector.shape_cast %55 : vector<4x16xf32> to vector<4x16x1xf32>
    %57 = vector.broadcast %56 : vector<4x16x1xf32> to vector<4x16x16xf32>
    %58 = arith.divf %54, %57 : vector<4x16x16xf32>
    %cst_16 = arith.constant dense<0.000000e+00> : vector<4x16x8xf32>
    %59 = tpu.matmul %58, %37, %cst_16 {dimension_numbers = #tpu.dot_dimension_numbers<[2], [1], [1], [2], [0, 0, 0, 1, 1, 2], [0], [0]>} : vector<4x16x16xf32>, vector<4x16x8xf32>, vector<4x16x8xf32> -> vector<4x16x8xf32>
    %60 = vector.extract_strided_slice %59 {offsets = [0, 0, 0], sizes = [1, 16, 8], strides = [1, 1, 1]} : vector<4x16x8xf32> to vector<1x16x8xf32>
    %61 = vector.shape_cast %60 : vector<1x16x8xf32> to vector<16x8xf32>
    %62 = vector.extract_strided_slice %59 {offsets = [1, 0, 0], sizes = [1, 16, 8], strides = [1, 1, 1]} : vector<4x16x8xf32> to vector<1x16x8xf32>
    %63 = vector.shape_cast %62 : vector<1x16x8xf32> to vector<16x8xf32>
    %64 = vector.extract_strided_slice %59 {offsets = [2, 0, 0], sizes = [1, 16, 8], strides = [1, 1, 1]} : vector<4x16x8xf32> to vector<1x16x8xf32>
    %65 = vector.shape_cast %64 : vector<1x16x8xf32> to vector<16x8xf32>
    %66 = vector.extract_strided_slice %59 {offsets = [3, 0, 0], sizes = [1, 16, 8], strides = [1, 1, 1]} : vector<4x16x8xf32> to vector<1x16x8xf32>
    %67 = vector.shape_cast %66 : vector<1x16x8xf32> to vector<16x8xf32>
    %68 = tpu.concatenate %61, %63, %65, %67 in 1 : vector<16x8xf32>, vector<16x8xf32>, vector<16x8xf32>, vector<16x8xf32> -> vector<16x32xf32>
    %c0_17 = arith.constant 0 : index
    %c0_18 = arith.constant 0 : index
    %69 = vector.load %arg5[%c0_17, %c0_18] : memref<32x32xf32, #tpu.memory_space<vmem>>, vector<32x32xf32>
    %cst_19 = arith.constant dense<0.000000e+00> : vector<16x32xf32>
    %70 = tpu.matmul %68, %69, %cst_19 {dimension_numbers = #tpu.dot_dimension_numbers<[1], [0], [0], [1], [0, 0, 1, 1], [], []>} : vector<16x32xf32>, vector<32x32xf32>, vector<16x32xf32> -> vector<16x32xf32>
    %71 = vector.extract_strided_slice %3 {offsets = [0, 0], sizes = [1, 32], strides = [1, 1]} : vector<6x32xf32> to vector<1x32xf32>
    %72 = vector.broadcast %71 : vector<1x32xf32> to vector<16x32xf32>
    %73 = arith.addf %70, %72 : vector<16x32xf32>
    %74 = arith.addf %0, %73 : vector<16x32xf32>
    %75 = arith.addf %74, %45 : vector<16x32xf32>
    %76 = vector.extract_strided_slice %3 {offsets = [2, 0], sizes = [1, 32], strides = [1, 1]} : vector<6x32xf32> to vector<1x32xf32>
    %77 = vector.extract_strided_slice %3 {offsets = [3, 0], sizes = [1, 32], strides = [1, 1]} : vector<6x32xf32> to vector<1x32xf32>
    %cst_20 = arith.constant dense<0.000000e+00> : vector<16xf32>
    %78 = vector.multi_reduction <add>, %75, %cst_20 [1] : vector<16x32xf32> to vector<16xf32>
    %79 = vector.shape_cast %78 : vector<16xf32> to vector<16x1xf32>
    %cst_21 = arith.constant 3.200000e+01 : f32
    %80 = vector.broadcast %cst_21 : f32 to vector<16x1xf32>
    %81 = arith.divf %79, %80 : vector<16x1xf32>
    %82 = vector.broadcast %81 : vector<16x1xf32> to vector<16x32xf32>
    %83 = arith.subf %75, %82 : vector<16x32xf32>
    %84 = arith.mulf %83, %83 : vector<16x32xf32>
    %cst_22 = arith.constant dense<0.000000e+00> : vector<16xf32>
    %85 = vector.multi_reduction <add>, %84, %cst_22 [1] : vector<16x32xf32> to vector<16xf32>
    %86 = vector.shape_cast %85 : vector<16xf32> to vector<16x1xf32>
    %cst_23 = arith.constant 3.200000e+01 : f32
    %87 = vector.broadcast %cst_23 : f32 to vector<16x1xf32>
    %88 = arith.divf %86, %87 : vector<16x1xf32>
    %89 = vector.broadcast %81 : vector<16x1xf32> to vector<16x32xf32>
    %90 = arith.subf %75, %89 : vector<16x32xf32>
    %cst_24 = arith.constant 9.99999997E-7 : f32
    %91 = vector.broadcast %cst_24 : f32 to vector<16x1xf32>
    %92 = arith.addf %88, %91 : vector<16x1xf32>
    %93 = math.rsqrt %92 : vector<16x1xf32>
    %94 = vector.broadcast %93 : vector<16x1xf32> to vector<16x32xf32>
    %95 = arith.mulf %90, %94 : vector<16x32xf32>
    %96 = vector.broadcast %76 : vector<1x32xf32> to vector<16x32xf32>
    %97 = arith.mulf %95, %96 : vector<16x32xf32>
    %98 = vector.broadcast %77 : vector<1x32xf32> to vector<16x32xf32>
    %99 = arith.addf %97, %98 : vector<16x32xf32>
    %100 = vector.broadcast %2 : vector<16x1xf32> to vector<16x32xf32>
    %101 = arith.mulf %99, %100 : vector<16x32xf32>
    %c0_25 = arith.constant 0 : index
    %c0_26 = arith.constant 0 : index
    %102 = vector.load %arg6[%c0_25, %c0_26] : memref<32x128xf32, #tpu.memory_space<vmem>>, vector<32x128xf32>
    %cst_27 = arith.constant dense<0.000000e+00> : vector<16x128xf32>
    %103 = tpu.matmul %101, %102, %cst_27 {dimension_numbers = #tpu.dot_dimension_numbers<[1], [0], [0], [1], [0, 0, 1, 1], [], []>} : vector<16x32xf32>, vector<32x128xf32>, vector<16x128xf32> -> vector<16x128xf32>
    %c0_28 = arith.constant 0 : index
    %c0_29 = arith.constant 0 : index
    %104 = vector.load %arg7[%c0_28, %c0_29] : memref<1x128xf32, #tpu.memory_space<vmem>>, vector<1x128xf32>
    %105 = vector.broadcast %104 : vector<1x128xf32> to vector<16x128xf32>
    %106 = arith.addf %103, %105 : vector<16x128xf32>
    %107 = vector.extract_strided_slice %106 {offsets = [0, 0], sizes = [16, 64], strides = [1, 1]} : vector<16x128xf32> to vector<16x64xf32>
    %cst_30 = arith.constant 0.000000e+00 : f32
    %108 = vector.broadcast %cst_30 : f32 to vector<16x64xf32>
    %109 = arith.maximumf %107, %108 : vector<16x64xf32>
    %110 = vector.extract_strided_slice %106 {offsets = [0, 64], sizes = [16, 32], strides = [1, 1]} : vector<16x128xf32> to vector<16x32xf32>
    %111 = arith.negf %110 : vector<16x32xf32>
    %112 = math.exp %111 : vector<16x32xf32>
    %cst_31 = arith.constant 1.000000e+00 : f32
    %113 = vector.broadcast %cst_31 : f32 to vector<16x32xf32>
    %114 = arith.addf %113, %112 : vector<16x32xf32>
    %115 = arith.divf %113, %114 : vector<16x32xf32>
    %116 = vector.extract_strided_slice %106 {offsets = [0, 96], sizes = [16, 32], strides = [1, 1]} : vector<16x128xf32> to vector<16x32xf32>
    %117 = arith.mulf %115, %116 : vector<16x32xf32>
    %c0_32 = arith.constant 0 : index
    %c0_33 = arith.constant 0 : index
    %118 = vector.load %arg8[%c0_32, %c0_33] : memref<64x32xf32, #tpu.memory_space<vmem>>, vector<64x32xf32>
    %cst_34 = arith.constant dense<0.000000e+00> : vector<16x32xf32>
    %119 = tpu.matmul %109, %118, %cst_34 {dimension_numbers = #tpu.dot_dimension_numbers<[1], [0], [0], [1], [0, 0, 1, 1], [], []>} : vector<16x64xf32>, vector<64x32xf32>, vector<16x32xf32> -> vector<16x32xf32>
    %120 = vector.extract_strided_slice %3 {offsets = [1, 0], sizes = [1, 32], strides = [1, 1]} : vector<6x32xf32> to vector<1x32xf32>
    %121 = vector.broadcast %120 : vector<1x32xf32> to vector<16x32xf32>
    %122 = arith.addf %119, %121 : vector<16x32xf32>
    %123 = arith.addf %101, %122 : vector<16x32xf32>
    %124 = arith.addf %123, %117 : vector<16x32xf32>
    %125 = vector.extract_strided_slice %3 {offsets = [4, 0], sizes = [1, 32], strides = [1, 1]} : vector<6x32xf32> to vector<1x32xf32>
    %126 = vector.extract_strided_slice %3 {offsets = [5, 0], sizes = [1, 32], strides = [1, 1]} : vector<6x32xf32> to vector<1x32xf32>
    %cst_35 = arith.constant dense<0.000000e+00> : vector<16xf32>
    %127 = vector.multi_reduction <add>, %124, %cst_35 [1] : vector<16x32xf32> to vector<16xf32>
    %128 = vector.shape_cast %127 : vector<16xf32> to vector<16x1xf32>
    %cst_36 = arith.constant 3.200000e+01 : f32
    %129 = vector.broadcast %cst_36 : f32 to vector<16x1xf32>
    %130 = arith.divf %128, %129 : vector<16x1xf32>
    %131 = vector.broadcast %130 : vector<16x1xf32> to vector<16x32xf32>
    %132 = arith.subf %124, %131 : vector<16x32xf32>
    %133 = arith.mulf %132, %132 : vector<16x32xf32>
    %cst_37 = arith.constant dense<0.000000e+00> : vector<16xf32>
    %134 = vector.multi_reduction <add>, %133, %cst_37 [1] : vector<16x32xf32> to vector<16xf32>
    %135 = vector.shape_cast %134 : vector<16xf32> to vector<16x1xf32>
    %cst_38 = arith.constant 3.200000e+01 : f32
    %136 = vector.broadcast %cst_38 : f32 to vector<16x1xf32>
    %137 = arith.divf %135, %136 : vector<16x1xf32>
    %138 = vector.broadcast %130 : vector<16x1xf32> to vector<16x32xf32>
    %139 = arith.subf %124, %138 : vector<16x32xf32>
    %cst_39 = arith.constant 9.99999997E-7 : f32
    %140 = vector.broadcast %cst_39 : f32 to vector<16x1xf32>
    %141 = arith.addf %137, %140 : vector<16x1xf32>
    %142 = math.rsqrt %141 : vector<16x1xf32>
    %143 = vector.broadcast %142 : vector<16x1xf32> to vector<16x32xf32>
    %144 = arith.mulf %139, %143 : vector<16x32xf32>
    %145 = vector.broadcast %125 : vector<1x32xf32> to vector<16x32xf32>
    %146 = arith.mulf %144, %145 : vector<16x32xf32>
    %147 = vector.broadcast %126 : vector<1x32xf32> to vector<16x32xf32>
    %148 = arith.addf %146, %147 : vector<16x32xf32>
    %149 = vector.broadcast %2 : vector<16x1xf32> to vector<16x32xf32>
    %150 = arith.mulf %148, %149 : vector<16x32xf32>
    %c0_40 = arith.constant 0 : index
    %c0_41 = arith.constant 0 : index
    %151 = vector.load %arg10[%c0_40, %c0_41] : memref<16x32xf32, #tpu.memory_space<vmem>>, vector<16x32xf32>
    tpu.vector_store %arg10[%c0_40, %c0_41], %150 {strides = array<i32>} : memref<16x32xf32, #tpu.memory_space<vmem>>, vector<16x32xf32>,
    return
  }
}

</mosaic_0001>

<llo_original>
// kernel: ne.8
$region0: #{ne.8}
  %s0 = inlined_call_operand.vmem [shape: s32[2,8], index: 0, kind: input, shape index: {}]
  %s1 = inlined_call_operand.vmem [shape: s32[16], index: 1, kind: output, shape index: {}]
  $region1: #{ne.8} parent=0
    #allocation0 [shape = 'u8[4096]{0}', space=vmem, size = 0x1000, scoped, tag = 'scoped mem for output reshape']
    #allocation1 [shape = 'u8[4096]{0}', space=vmem, size = 0x1000, scoped, tag = 'scoped mem for input reshape']
    %s3 = sshllo.u32 0, 2
    %v4 = vld [vmem:[%s0] sm:%s3]
    %5 = vst [vmem:[#allocation1] sm:%s3] %v4
    %v6 = vld [vmem:[#allocation1] sm:$0x1]
    %vm7 = vcmask 64512
    %8 = vst.msk [vmem:[#allocation0] sm:$0x1] %vm7, %v6
    %s9 = scalar_lea.vmem [#allocation1], 1
    %v10 = vld [vmem:[%s9] sm:$0x1]
    %11 = vrot.lane.b32.xlu0 %v10, 8
    %v12 = vpop.permute.xlu0 %11
    %vm13 = vcmask 130112
    %14 = vst.msk [vmem:[#allocation0] sm:$0x1] %vm13, %v12
    %s16 = sshllo.u32 0, 1
    %v18 = vld [vmem:[#allocation0] sm:%s16]
    %s19 = sshllo.u32 0, 1
    %20 = vst [vmem:[%s1] sm:%s19] %v18

// kernel: encoder_layer.1
$region0: #{encoder_layer.1}
  #allocation0 [shape = 'u32[]', space=smem, size = 0x4, offset = 0x4, fixed_abs, tag = 'smem constant byte address 0x4 - core index']
  #allocation1 [shape = 'u32[144,128]{1,0:T(1,128)}', space=vmem, size = 0x12000, scoped, tag = 'internal scratch']
  %s0 = inlined_call_operand.hbm [shape: f32[16,32], index: 0, kind: input, shape index: {}]
  %s1 = inlined_call_operand.vmem [shape: f32[16,16], index: 1, kind: input, shape index: {}]
  %s2 = inlined_call_operand.vmem [shape: f32[16,1], index: 2, kind: input, shape index: {}]
  %s3 = inlined_call_operand.vmem [shape: f32[32,160], index: 3, kind: input, shape index: {}]
  %s4 = inlined_call_operand.hbm [shape: f32[1,160], index: 4, kind: input, shape index: {}]
  %s5 = inlined_call_operand.vmem [shape: f32[32,32], index: 5, kind: input, shape index: {}]
  %s6 = inlined_call_operand.vmem [shape: f32[32,128], index: 6, kind: input, shape index: {}]
  %s7 = inlined_call_operand.vmem [shape: f32[1,128], index: 7, kind: input, shape index: {}]
  %s8 = inlined_call_operand.vmem [shape: f32[64,32], index: 8, kind: input, shape index: {}]
  %s9 = inlined_call_operand.vmem [shape: f32[6,32], index: 9, kind: input, shape index: {}]
  %s10 = inlined_call_operand.hbm [shape: f32[16,32], index: 10, kind: output, shape index: {}]
  %s11 = sld [smem:[#allocation0]]
  $region58: #{encoder_layer.1} parent=0
    _
  %s13 = ssub.s32 1, %s11
  %s14 = scalar_select 0, %s13, %s11
  $region1: #{encoder_layer.1} parent=0
    #allocation2 [shape = 'u8[8192]{0}', space=vmem, size = 0x2000, scoped, tag = 'input window, operand 0, single buffered']
    #allocation3 [shape = 's32[1]{0}', space=sflag, size = 0x4, scoped, tag = 'scoped memory for encoder_layer.1']
    #allocation4 [shape = 's32[1]{0}', space=sflag, size = 0x4, scoped, tag = 'scoped memory for encoder_layer.1']
    #allocation5 [shape = 'u8[1024]{0}', space=vmem, size = 0x400, scoped, tag = 'input window, operand 4, single buffered']
    #allocation6 [shape = 's32[1]{0}', space=sflag, size = 0x4, scoped, tag = 'scoped memory for encoder_layer.1']
    #allocation7 [shape = 'u8[8192]{0}', space=vmem, size = 0x2000, scoped, tag = 'output window, operand 0, single buffered']
    %15 = vsyncpa [#allocation3], 0
    %16 = vsyncpa [#allocation6], 0
    %17 = vsyncpa [#allocation4], 0
    // Predicated region
    $region2: #{encoder_layer.1} parent=1 // pred_check
      _
    $region3: #{encoder_layer.1} parent=1 // pred_check_branch
      %19 = sbr.rel (0) target = $region5
    $region4: #{encoder_layer.1} parent=1 // pred_region
      %s21 = ssub.s32 256, 256
      %22 = vsyncadd [#allocation3], %s21
      %s23 = sshll.u32 [#allocation2], 4
      %s24 = int_to_ptr.vmem [resolvable:$true] %s23
      %29 = dma.hbm_to_vmem [thread:$0]  %s0, 256, %s24, [#allocation3], 128, 128, 8
    $region5: #{encoder_layer.1} parent=1 // pred_fallthru
      _
    // Predicated region
    $region6: #{encoder_layer.1} parent=1 // pred_check
      _
    $region7: #{encoder_layer.1} parent=1 // pred_check_branch
      %31 = sbr.rel (0) target = $region9
    $region8: #{encoder_layer.1} parent=1 // pred_region
      _
    $region9: #{encoder_layer.1} parent=1 // pred_fallthru
      _
    // Predicated region
    $region10: #{encoder_layer.1} parent=1 // pred_check
      _
    $region11: #{encoder_layer.1} parent=1 // pred_check_branch
      %33 = sbr.rel (0) target = $region13
    $region12: #{encoder_layer.1} parent=1 // pred_region
      _
    $region13: #{encoder_layer.1} parent=1 // pred_fallthru
      _
    // Predicated region
    $region14: #{encoder_layer.1} parent=1 // pred_check
      _
    $region15: #{encoder_layer.1} parent=1 // pred_check_branch
      %35 = sbr.rel (0) target = $region17
    $region16: #{encoder_layer.1} parent=1 // pred_region
      _
    $region17: #{encoder_layer.1} parent=1 // pred_fallthru
      _
    // Predicated region
    $region18: #{encoder_layer.1} parent=1 // pred_check
      _
    $region19: #{encoder_layer.1} parent=1 // pred_check_branch
      %37 = sbr.rel (0) target = $region21
    $region20: #{encoder_layer.1} parent=1 // pred_region
      %s39 = ssub.s32 32, 32
      %40 = vsyncadd [#allocation6], %s39
      %s42 = sshll.u32 [#allocation5], 4
      %s43 = int_to_ptr.vmem [resolvable:$true] %s42
      %45 = dma.hbm_to_vmem [thread:$0]  %s4, 32, %s43, [#allocation6]
    $region21: #{encoder_layer.1} parent=1 // pred_fallthru
      _
    // Predicated region
    $region22: #{encoder_layer.1} parent=1 // pred_check
      _
    $region23: #{encoder_layer.1} parent=1 // pred_check_branch
      %47 = sbr.rel (0) target = $region25
    $region24: #{encoder_layer.1} parent=1 // pred_region
      _
    $region25: #{encoder_layer.1} parent=1 // pred_fallthru
      _
    // Predicated region
    $region26: #{encoder_layer.1} parent=1 // pred_check
      _
    $region27: #{encoder_layer.1} parent=1 // pred_check_branch
      %49 = sbr.rel (0) target = $region29
    $region28: #{encoder_layer.1} parent=1 // pred_region
      _
    $region29: #{encoder_layer.1} parent=1 // pred_fallthru
      _
    // Predicated region
    $region30: #{encoder_layer.1} parent=1 // pred_check
      _
    $region31: #{encoder_layer.1} parent=1 // pred_check_branch
      %51 = sbr.rel (0) target = $region33
    $region32: #{encoder_layer.1} parent=1 // pred_region
      _
    $region33: #{encoder_layer.1} parent=1 // pred_fallthru
      _
    // Predicated region
    $region34: #{encoder_layer.1} parent=1 // pred_check
      _
    $region35: #{encoder_layer.1} parent=1 // pred_check_branch
      %53 = sbr.rel (0) target = $region37
    $region36: #{encoder_layer.1} parent=1 // pred_region
      _
    $region37: #{encoder_layer.1} parent=1 // pred_fallthru
      _
    // Predicated region
    $region38: #{encoder_layer.1} parent=1 // pred_check
      _
    $region39: #{encoder_layer.1} parent=1 // pred_check_branch
      %55 = sbr.rel (0) target = $region41
    $region40: #{encoder_layer.1} parent=1 // pred_region
      _
    $region41: #{encoder_layer.1} parent=1 // pred_fallthru
      _
    // Predicated region
    $region42: #{encoder_layer.1} parent=1 // pred_check
      _
    $region43: #{encoder_layer.1} parent=1 // pred_check_branch
      %57 = sbr.rel (0) target = $region45
    $region44: #{encoder_layer.1} parent=1 // pred_region
      %58 = dma.done [#allocation3], 256
    $region45: #{encoder_layer.1} parent=1 // pred_fallthru
      _
    // Predicated region
    $region46: #{encoder_layer.1} parent=1 // pred_check
      _
    $region47: #{encoder_layer.1} parent=1 // pred_check_branch
      %60 = sbr.rel (0) target = $region49
    $region48: #{encoder_layer.1} parent=1 // pred_region
      %61 = dma.done [#allocation6], 32
    $region49: #{encoder_layer.1} parent=1 // pred_fallthru
      _
    %v62 = vld [vmem:[#allocation2] sm:$0xff]
    %v63 = vld [vmem:[#allocation2 + $0x8] sm:$0xff]
    %v64 = vld [vmem:[%s1] sm:$0xff]
    %v65 = vld [vmem:[%s1 + $0x8] sm:$0xff]
    %v66 = vld [vmem:[%s2] sm:$0xff]
    %v67 = vld [vmem:[%s2 + $0x8] sm:$0xff]
    %v68 = vld [vmem:[%s9] sm:$0x3f]
    %v69 = vld [vmem:[%s3] sm:$0xff]
    %v70 = vld [vmem:[%s3 + $0x8] sm:$0xff]
    %v71 = vld [vmem:[%s3 + $0x10] sm:$0xff]
    %v72 = vld [vmem:[%s3 + $0x18] sm:$0xff]
    %v73 = vld [vmem:[%s3 + $0x20] sm:$0xff]
    %v74 = vld [vmem:[%s3 + $0x28] sm:$0xff]
    %v75 = vld [vmem:[%s3 + $0x30] sm:$0xff]
    %v76 = vld [vmem:[%s3 + $0x38] sm:$0xff]
    %v77 = vld [vmem:[#allocation5] sm:$0x3]
    %v79 = vlaneseq
    %v80 = vshrl.u32 %v79, 7
    %v81 = vsub.s32 0, %v80
    %v82 = vrot.slane %v77, %v81
    %v83 = vlaneseq
    %v84 = vshrl.u32 %v83, 7
    %v85 = vsub.s32 1, %v84
    %v86 = vrot.slane %v77, %v85
    %vm89 = vcmask 261120
    %v91 = vsel %vm89, %v62, 0
    %v94 = vsel %vm89, %v63, 0
    %96 = vmatprep.subr.mxu0 %v70
    %97 = vmatpush1.msra.mxu0 %v69
    %98 = vmatprep.subr.mxu0 %v72
    %99 = vmatpush1.msra.mxu0 %v71
    %100 = vmatprep.subr.mxu0 %v74
    %101 = vmatpush1.msra.mxu0 %v73
    %102 = vmatprep.subr.mxu0 %v76
    %103 = vmatpush1.msra.mxu0 %v75
    %104 = vmatprep.subr.mxu0 0.0
    %105 = vmatpush1.msra.mxu0 0.0
    %106 = vmatprep.subr.mxu0 0.0
    %107 = vmatpush1.msra.mxu0 0.0
    %108 = vmatprep.subr.mxu0 0.0
    %109 = vmatpush1.msra.mxu0 0.0
    %110 = vmatprep.subr.mxu0 0.0
    %111 = vmatpush1.msra.mxu0 0.0
    %112 = vmatprep.subr.mxu0 0.0
    %113 = vmatpush1.msra.mxu0 0.0
    %114 = vmatprep.subr.mxu0 0.0
    %115 = vmatpush1.msra.mxu0 0.0
    %116 = vmatprep.subr.mxu0 0.0
    %117 = vmatpush1.msra.mxu0 0.0
    %118 = vmatprep.subr.mxu0 0.0
    %119 = vmatpush1.msra.mxu0 0.0
    %120 = vmatprep.subr.mxu0 0.0
    %121 = vmatpush1.msra.mxu0 0.0
    %122 = vmatprep.subr.mxu0 0.0
    %123 = vmatpush1.msra.mxu0 0.0
    %124 = vmatprep.subr.mxu0 0.0
    %125 = vmatpush1.msra.mxu0 0.0
    %126 = vmatprep.subr.mxu0 0.0
    %127 = vmatpush1.msra.mxu0 0.0
    %128 = vmatprep.subr.mxu0 0.0
    %129 = vmatpush1.msra.mxu0 0.0
    %130 = vmatprep.subr.mxu0 0.0
    %131 = vmatpush1.msra.mxu0 0.0
    %132 = vmatprep.subr.mxu0 0.0
    %133 = vmatpush1.msra.mxu0 0.0
    %134 = vmatprep.subr.mxu0 0.0
    %135 = vmatpush1.msra.mxu0 0.0
    %136 = vmatprep.subr.mxu0 0.0
    %137 = vmatpush1.msra.mxu0 0.0
    %138 = vmatprep.subr.mxu0 0.0
    %139 = vmatpush1.msra.mxu0 0.0
    %140 = vmatprep.subr.mxu0 0.0
    %141 = vmatpush1.msra.mxu0 0.0
    %142 = vmatprep.subr.mxu0 0.0
    %143 = vmatpush1.msra.mxu0 0.0
    %144 = vmatprep.subr.mxu0 0.0
    %145 = vmatpush1.msra.mxu0 0.0
    %146 = vmatprep.subr.mxu0 0.0
    %147 = vmatpush1.msra.mxu0 0.0
    %148 = vmatprep.subr.mxu0 0.0
    %149 = vmatpush1.msra.mxu0 0.0
    %150 = vmatprep.subr.mxu0 0.0
    %151 = vmatpush1.msra.mxu0 0.0
    %152 = vmatprep.subr.mxu0 0.0
    %153 = vmatpush1.msra.mxu0 0.0
    %154 = vmatprep.subr.mxu0 0.0
    %155 = vmatpush1.msra.mxu0 0.0
    %156 = vmatprep.subr.mxu0 0.0
    %157 = vmatpush1.msra.mxu0 0.0
    %158 = vmatprep.subr.mxu0 0.0
    %159 = vmatpush1.msra.mxu0 0.0
    %160 = vmatprep.mubr.f32.mxu0 0.0
    %161 = vmatmul.mubr.f32.gmra.mrb[0].mxu0 %v91
    %v162 = vpop.f32.mrb[0].mxu0
    %v163 = vadd.f32 %v82, %v162
    %v164 = vpop.f32.mrb[0].mxu0
    %v165 = vadd.f32 %v86, %v164
    %166 = vmatprep.mubr.f32.mxu0 0.0
    %167 = vmatmul.mubr.f32.gmra.mrb[0].mxu0 %v94
    %v168 = vpop.f32.mrb[0].mxu0
    %v169 = vadd.f32 %v82, %v168
    %v170 = vpop.f32.mrb[0].mxu0
    %v171 = vadd.f32 %v86, %v170
    %172 = vdwg.mxu0
    %175 = vrot.lane.b32.xlu0 %v163, 120
    %v176 = vpop.permute.xlu0 %175
    %177 = vrot.lane.b32.xlu0 %v169, 120
    %v178 = vpop.permute.xlu0 %177
    %181 = vrot.lane.b32.xlu0 %v163, 112
    %v182 = vpop.permute.xlu0 %181
    %183 = vrot.lane.b32.xlu0 %v169, 112
    %v184 = vpop.permute.xlu0 %183
    %187 = vrot.lane.b32.xlu0 %v163, 104
    %v188 = vpop.permute.xlu0 %187
    %189 = vrot.lane.b32.xlu0 %v169, 104
    %v190 = vpop.permute.xlu0 %189
    %v193 = vmul.f32 %v163, 0.35355338
    %v194 = vmul.f32 %v169, 0.35355338
    %v195 = vmul.f32 %v176, 0.35355338
    %v196 = vmul.f32 %v178, 0.35355338
    %v197 = vmul.f32 %v182, 0.35355338
    %v198 = vmul.f32 %v184, 0.35355338
    %v199 = vmul.f32 %v188, 0.35355338
    %v200 = vmul.f32 %v190, 0.35355338
    %v201 = vxor.u32 %v163, 2147483648
    %v202 = vxor.u32 %v169, 2147483648
    %v203 = vmul.f32 %v201, 1.442695
    %v204 = vpow.pop %v203
    %v205 = vmul.f32 %v202, 1.442695
    %v206 = vpow.pop %v205
    %v207 = vadd.f32 %v204, 1.0
    %v208 = vadd.f32 %v206, 1.0
    %v209 = vrcp.pop %v207
    %v210 = vmul.f32 1.0, %v209
    %v211 = vrcp.pop %v208
    %v212 = vmul.f32 1.0, %v211
    %215 = vrot.lane.b32.xlu0 %v165, 96
    %v216 = vpop.permute.xlu0 %215
    %217 = vrot.lane.b32.xlu0 %v171, 96
    %v218 = vpop.permute.xlu0 %217
    %v221 = vmul.f32 %v210, %v216
    %v222 = vmul.f32 %v212, %v218
    %223 = vrot.lane.b32.xlu0 %v163, 96
    %v224 = vpop.permute.xlu0 %223
    %225 = vrot.lane.b32.xlu0 %v169, 96
    %v226 = vpop.permute.xlu0 %225
    %vm227 = vcmask 64512
    %v229 = vsel %vm227, %v193, 0
    %v232 = vsel %vm227, %v194, 0
    %v234 = vsel %vm227, %v224, 0
    %v236 = vsel %vm227, %v226, 0
    %238 = vmatprep.subr.mxu0 0.0
    %239 = vmatpush1.xpose.msra.mxu0 %v234
    %240 = vmatprep.subr.mxu0 0.0
    %241 = vmatpush1.xpose.msra.mxu0 %v236
    %242 = vmatprep.subr.mxu0 0.0
    %243 = vmatpush1.xpose.msra.mxu0 0.0
    %244 = vmatprep.subr.mxu0 0.0
    %245 = vmatpush1.xpose.msra.mxu0 0.0
    %246 = vmatprep.subr.mxu0 0.0
    %247 = vmatpush1.xpose.msra.mxu0 0.0
    %248 = vmatprep.subr.mxu0 0.0
    %249 = vmatpush1.xpose.msra.mxu0 0.0
    %250 = vmatprep.subr.mxu0 0.0
    %251 = vmatpush1.xpose.msra.mxu0 0.0
    %252 = vmatprep.subr.mxu0 0.0
    %253 = vmatpush1.xpose.msra.mxu0 0.0
    %254 = vmatprep.subr.mxu0 0.0
    %255 = vmatpush1.xpose.msra.mxu0 0.0
    %256 = vmatprep.subr.mxu0 0.0
    %257 = vmatpush1.xpose.msra.mxu0 0.0
    %258 = vmatprep.subr.mxu0 0.0
    %259 = vmatpush1.xpose.msra.mxu0 0.0
    %260 = vmatprep.subr.mxu0 0.0
    %261 = vmatpush1.xpose.msra.mxu0 0.0
    %262 = vmatprep.subr.mxu0 0.0
    %263 = vmatpush1.xpose.msra.mxu0 0.0
    %264 = vmatprep.subr.mxu0 0.0
    %265 = vmatpush1.xpose.msra.mxu0 0.0
    %266 = vmatprep.subr.mxu0 0.0
    %267 = vmatpush1.xpose.msra.mxu0 0.0
    %268 = vmatprep.subr.mxu0 0.0
    %269 = vmatpush1.xpose.msra.mxu0 0.0
    %270 = vmatprep.subr.mxu0 0.0
    %271 = vmatpush1.xpose.msra.mxu0 0.0
    %272 = vmatprep.subr.mxu0 0.0
    %273 = vmatpush1.xpose.msra.mxu0 0.0
    %274 = vmatprep.subr.mxu0 0.0
    %275 = vmatpush1.xpose.msra.mxu0 0.0
    %276 = vmatprep.subr.mxu0 0.0
    %277 = vmatpush1.xpose.msra.mxu0 0.0
    %278 = vmatprep.subr.mxu0 0.0
    %279 = vmatpush1.xpose.msra.mxu0 0.0
    %280 = vmatprep.subr.mxu0 0.0
    %281 = vmatpush1.xpose.msra.mxu0 0.0
    %282 = vmatprep.subr.mxu0 0.0
    %283 = vmatpush1.xpose.msra.mxu0 0.0
    %284 = vmatprep.subr.mxu0 0.0
    %285 = vmatpush1.xpose.msra.mxu0 0.0
    %286 = vmatprep.subr.mxu0 0.0
    %287 = vmatpush1.xpose.msra.mxu0 0.0
    %288 = vmatprep.subr.mxu0 0.0
    %289 = vmatpush1.xpose.msra.mxu0 0.0
    %290 = vmatprep.subr.mxu0 0.0
    %291 = vmatpush1.xpose.msra.mxu0 0.0
    %292 = vmatprep.subr.mxu0 0.0
    %293 = vmatpush1.xpose.msra.mxu0 0.0
    %294 = vmatprep.subr.mxu0 0.0
    %295 = vmatpush1.xpose.msra.mxu0 0.0
    %296 = vmatprep.subr.mxu0 0.0
    %297 = vmatpush1.xpose.msra.mxu0 0.0
    %298 = vmatprep.subr.mxu0 0.0
    %299 = vmatpush1.xpose.msra.mxu0 0.0
    %300 = vmatprep.subr.mxu0 0.0
    %301 = vmatpush1.xpose.msra.mxu0 0.0
    %302 = vmatprep.mubr.f32.mxu0 0.0
    %303 = vmatmul.mubr.f32.gmra.mrb[0].mxu0 %v229
    %v304 = vpop.f32.mrb[0].mxu0
    %v305 = vadd.f32 %v64, %v304
    %v306 = vpop.f32.mrb[0].mxu0
    %307 = vmatprep.mubr.f32.mxu0 0.0
    %308 = vmatmul.mubr.f32.gmra.mrb[0].mxu0 %v232
    %v309 = vpop.f32.mrb[0].mxu0
    %v310 = vadd.f32 %v65, %v309
    %v311 = vpop.f32.mrb[0].mxu0
    %312 = vdwg.mxu0
    %313 = vrot.lane.b32.xlu0 %v176, 96
    %v314 = vpop.permute.xlu0 %313
    %315 = vrot.lane.b32.xlu0 %v178, 96
    %v316 = vpop.permute.xlu0 %315
    %v318 = vsel %vm227, %v195, 0
    %v321 = vsel %vm227, %v196, 0
    %v323 = vsel %vm227, %v314, 0
    %v325 = vsel %vm227, %v316, 0
    %327 = vmatprep.subr.mxu0 0.0
    %328 = vmatpush1.xpose.msra.mxu0 %v323
    %329 = vmatprep.subr.mxu0 0.0
    %330 = vmatpush1.xpose.msra.mxu0 %v325
    %331 = vmatprep.subr.mxu0 0.0
    %332 = vmatpush1.xpose.msra.mxu0 0.0
    %333 = vmatprep.subr.mxu0 0.0
    %334 = vmatpush1.xpose.msra.mxu0 0.0
    %335 = vmatprep.subr.mxu0 0.0
    %336 = vmatpush1.xpose.msra.mxu0 0.0
    %337 = vmatprep.subr.mxu0 0.0
    %338 = vmatpush1.xpose.msra.mxu0 0.0
    %339 = vmatprep.subr.mxu0 0.0
    %340 = vmatpush1.xpose.msra.mxu0 0.0
    %341 = vmatprep.subr.mxu0 0.0
    %342 = vmatpush1.xpose.msra.mxu0 0.0
    %343 = vmatprep.subr.mxu0 0.0
    %344 = vmatpush1.xpose.msra.mxu0 0.0
    %345 = vmatprep.subr.mxu0 0.0
    %346 = vmatpush1.xpose.msra.mxu0 0.0
    %347 = vmatprep.subr.mxu0 0.0
    %348 = vmatpush1.xpose.msra.mxu0 0.0
    %349 = vmatprep.subr.mxu0 0.0
    %350 = vmatpush1.xpose.msra.mxu0 0.0
    %351 = vmatprep.subr.mxu0 0.0
    %352 = vmatpush1.xpose.msra.mxu0 0.0
    %353 = vmatprep.subr.mxu0 0.0
    %354 = vmatpush1.xpose.msra.mxu0 0.0
    %355 = vmatprep.subr.mxu0 0.0
    %356 = vmatpush1.xpose.msra.mxu0 0.0
    %357 = vmatprep.subr.mxu0 0.0
    %358 = vmatpush1.xpose.msra.mxu0 0.0
    %359 = vmatprep.subr.mxu0 0.0
    %360 = vmatpush1.xpose.msra.mxu0 0.0
    %361 = vmatprep.subr.mxu0 0.0
    %362 = vmatpush1.xpose.msra.mxu0 0.0
    %363 = vmatprep.subr.mxu0 0.0
    %364 = vmatpush1.xpose.msra.mxu0 0.0
    %365 = vmatprep.subr.mxu0 0.0
    %366 = vmatpush1.xpose.msra.mxu0 0.0
    %367 = vmatprep.subr.mxu0 0.0
    %368 = vmatpush1.xpose.msra.mxu0 0.0
    %369 = vmatprep.subr.mxu0 0.0
    %370 = vmatpush1.xpose.msra.mxu0 0.0
    %371 = vmatprep.subr.mxu0 0.0
    %372 = vmatpush1.xpose.msra.mxu0 0.0
    %373 = vmatprep.subr.mxu0 0.0
    %374 = vmatpush1.xpose.msra.mxu0 0.0
    %375 = vmatprep.subr.mxu0 0.0
    %376 = vmatpush1.xpose.msra.mxu0 0.0
    %377 = vmatprep.subr.mxu0 0.0
    %378 = vmatpush1.xpose.msra.mxu0 0.0
    %379 = vmatprep.subr.mxu0 0.0
    %380 = vmatpush1.xpose.msra.mxu0 0.0
    %381 = vmatprep.subr.mxu0 0.0
    %382 = vmatpush1.xpose.msra.mxu0 0.0
    %383 = vmatprep.subr.mxu0 0.0
    %384 = vmatpush1.xpose.msra.mxu0 0.0
    %385 = vmatprep.subr.mxu0 0.0
    %386 = vmatpush1.xpose.msra.mxu0 0.0
    %387 = vmatprep.subr.mxu0 0.0
    %388 = vmatpush1.xpose.msra.mxu0 0.0
    %389 = vmatprep.subr.mxu0 0.0
    %390 = vmatpush1.xpose.msra.mxu0 0.0
    %391 = vmatprep.mubr.f32.mxu0 0.0
    %392 = vmatmul.mubr.f32.gmra.mrb[0].mxu0 %v318
    %v393 = vpop.f32.mrb[0].mxu0
    %v394 = vadd.f32 %v64, %v393
    %v395 = vpop.f32.mrb[0].mxu0
    %396 = vmatprep.mubr.f32.mxu0 0.0
    %397 = vmatmul.mubr.f32.gmra.mrb[0].mxu0 %v321
    %v398 = vpop.f32.mrb[0].mxu0
    %v399 = vadd.f32 %v65, %v398
    %v400 = vpop.f32.mrb[0].mxu0
    %401 = vdwg.mxu0
    %402 = vrot.lane.b32.xlu0 %v182, 96
    %v403 = vpop.permute.xlu0 %402
    %404 = vrot.lane.b32.xlu0 %v184, 96
    %v405 = vpop.permute.xlu0 %404
    %v407 = vsel %vm227, %v197, 0
    %v410 = vsel %vm227, %v198, 0
    %v412 = vsel %vm227, %v403, 0
    %v414 = vsel %vm227, %v405, 0
    %416 = vmatprep.subr.mxu0 0.0
    %417 = vmatpush1.xpose.msra.mxu0 %v412
    %418 = vmatprep.subr.mxu0 0.0
    %419 = vmatpush1.xpose.msra.mxu0 %v414
    %420 = vmatprep.subr.mxu0 0.0
    %421 = vmatpush1.xpose.msra.mxu0 0.0
    %422 = vmatprep.subr.mxu0 0.0
    %423 = vmatpush1.xpose.msra.mxu0 0.0
    %424 = vmatprep.subr.mxu0 0.0
    %425 = vmatpush1.xpose.msra.mxu0 0.0
    %426 = vmatprep.subr.mxu0 0.0
    %427 = vmatpush1.xpose.msra.mxu0 0.0
    %428 = vmatprep.subr.mxu0 0.0
    %429 = vmatpush1.xpose.msra.mxu0 0.0
    %430 = vmatprep.subr.mxu0 0.0
    %431 = vmatpush1.xpose.msra.mxu0 0.0
    %432 = vmatprep.subr.mxu0 0.0
    %433 = vmatpush1.xpose.msra.mxu0 0.0
    %434 = vmatprep.subr.mxu0 0.0
    %435 = vmatpush1.xpose.msra.mxu0 0.0
    %436 = vmatprep.subr.mxu0 0.0
    %437 = vmatpush1.xpose.msra.mxu0 0.0
    %438 = vmatprep.subr.mxu0 0.0
    %439 = vmatpush1.xpose.msra.mxu0 0.0
    %440 = vmatprep.subr.mxu0 0.0
    %441 = vmatpush1.xpose.msra.mxu0 0.0
    %442 = vmatprep.subr.mxu0 0.0
    %443 = vmatpush1.xpose.msra.mxu0 0.0
    %444 = vmatprep.subr.mxu0 0.0
    %445 = vmatpush1.xpose.msra.mxu0 0.0
    %446 = vmatprep.subr.mxu0 0.0
    %447 = vmatpush1.xpose.msra.mxu0 0.0
    %448 = vmatprep.subr.mxu0 0.0
    %449 = vmatpush1.xpose.msra.mxu0 0.0
    %450 = vmatprep.subr.mxu0 0.0
    %451 = vmatpush1.xpose.msra.mxu0 0.0
    %452 = vmatprep.subr.mxu0 0.0
    %453 = vmatpush1.xpose.msra.mxu0 0.0
    %454 = vmatprep.subr.mxu0 0.0
    %455 = vmatpush1.xpose.msra.mxu0 0.0
    %456 = vmatprep.subr.mxu0 0.0
    %457 = vmatpush1.xpose.msra.mxu0 0.0
    %458 = vmatprep.subr.mxu0 0.0
    %459 = vmatpush1.xpose.msra.mxu0 0.0
    %460 = vmatprep.subr.mxu0 0.0
    %461 = vmatpush1.xpose.msra.mxu0 0.0
    %462 = vmatprep.subr.mxu0 0.0
    %463 = vmatpush1.xpose.msra.mxu0 0.0
    %464 = vmatprep.subr.mxu0 0.0
    %465 = vmatpush1.xpose.msra.mxu0 0.0
    %466 = vmatprep.subr.mxu0 0.0
    %467 = vmatpush1.xpose.msra.mxu0 0.0
    %468 = vmatprep.subr.mxu0 0.0
    %469 = vmatpush1.xpose.msra.mxu0 0.0
    %470 = vmatprep.subr.mxu0 0.0
    %471 = vmatpush1.xpose.msra.mxu0 0.0
    %472 = vmatprep.subr.mxu0 0.0
    %473 = vmatpush1.xpose.msra.mxu0 0.0
    %474 = vmatprep.subr.mxu0 0.0
    %475 = vmatpush1.xpose.msra.mxu0 0.0
    %476 = vmatprep.subr.mxu0 0.0
    %477 = vmatpush1.xpose.msra.mxu0 0.0
    %478 = vmatprep.subr.mxu0 0.0
    %479 = vmatpush1.xpose.msra.mxu0 0.0
    %480 = vmatprep.mubr.f32.mxu0 0.0
    %481 = vmatmul.mubr.f32.gmra.mrb[0].mxu0 %v407
    %v482 = vpop.f32.mrb[0].mxu0
    %v483 = vadd.f32 %v64, %v482
    %v484 = vpop.f32.mrb[0].mxu0
    %485 = vmatprep.mubr.f32.mxu0 0.0
    %486 = vmatmul.mubr.f32.gmra.mrb[0].mxu0 %v410
    %v487 = vpop.f32.mrb[0].mxu0
    %v488 = vadd.f32 %v65, %v487
    %v489 = vpop.f32.mrb[0].mxu0
    %490 = vdwg.mxu0
    %491 = vrot.lane.b32.xlu0 %v188, 96
    %v492 = vpop.permute.xlu0 %491
    %493 = vrot.lane.b32.xlu0 %v190, 96
    %v494 = vpop.permute.xlu0 %493
    %v496 = vsel %vm227, %v199, 0
    %v499 = vsel %vm227, %v200, 0
    %v501 = vsel %vm227, %v492, 0
    %v503 = vsel %vm227, %v494, 0
    %505 = vmatprep.subr.mxu0 0.0
    %506 = vmatpush1.xpose.msra.mxu0 %v501
    %507 = vmatprep.subr.mxu0 0.0
    %508 = vmatpush1.xpose.msra.mxu0 %v503
    %509 = vmatprep.subr.mxu0 0.0
    %510 = vmatpush1.xpose.msra.mxu0 0.0
    %511 = vmatprep.subr.mxu0 0.0
    %512 = vmatpush1.xpose.msra.mxu0 0.0
    %513 = vmatprep.subr.mxu0 0.0
    %514 = vmatpush1.xpose.msra.mxu0 0.0
    %515 = vmatprep.subr.mxu0 0.0
    %516 = vmatpush1.xpose.msra.mxu0 0.0
    %517 = vmatprep.subr.mxu0 0.0
    %518 = vmatpush1.xpose.msra.mxu0 0.0
    %519 = vmatprep.subr.mxu0 0.0
    %520 = vmatpush1.xpose.msra.mxu0 0.0
    %521 = vmatprep.subr.mxu0 0.0
    %522 = vmatpush1.xpose.msra.mxu0 0.0
    %523 = vmatprep.subr.mxu0 0.0
    %524 = vmatpush1.xpose.msra.mxu0 0.0
    %525 = vmatprep.subr.mxu0 0.0
    %526 = vmatpush1.xpose.msra.mxu0 0.0
    %527 = vmatprep.subr.mxu0 0.0
    %528 = vmatpush1.xpose.msra.mxu0 0.0
    %529 = vmatprep.subr.mxu0 0.0
    %530 = vmatpush1.xpose.msra.mxu0 0.0
    %531 = vmatprep.subr.mxu0 0.0
    %532 = vmatpush1.xpose.msra.mxu0 0.0
    %533 = vmatprep.subr.mxu0 0.0
    %534 = vmatpush1.xpose.msra.mxu0 0.0
    %535 = vmatprep.subr.mxu0 0.0
    %536 = vmatpush1.xpose.msra.mxu0 0.0
    %537 = vmatprep.subr.mxu0 0.0
    %538 = vmatpush1.xpose.msra.mxu0 0.0
    %539 = vmatprep.subr.mxu0 0.0
    %540 = vmatpush1.xpose.msra.mxu0 0.0
    %541 = vmatprep.subr.mxu0 0.0
    %542 = vmatpush1.xpose.msra.mxu0 0.0
    %543 = vmatprep.subr.mxu0 0.0
    %544 = vmatpush1.xpose.msra.mxu0 0.0
    %545 = vmatprep.subr.mxu0 0.0
    %546 = vmatpush1.xpose.msra.mxu0 0.0
    %547 = vmatprep.subr.mxu0 0.0
    %548 = vmatpush1.xpose.msra.mxu0 0.0
    %549 = vmatprep.subr.mxu0 0.0
    %550 = vmatpush1.xpose.msra.mxu0 0.0
    %551 = vmatprep.subr.mxu0 0.0
    %552 = vmatpush1.xpose.msra.mxu0 0.0
    %553 = vmatprep.subr.mxu0 0.0
    %554 = vmatpush1.xpose.msra.mxu0 0.0
    %555 = vmatprep.subr.mxu0 0.0
    %556 = vmatpush1.xpose.msra.mxu0 0.0
    %557 = vmatprep.subr.mxu0 0.0
    %558 = vmatpush1.xpose.msra.mxu0 0.0
    %559 = vmatprep.subr.mxu0 0.0
    %560 = vmatpush1.xpose.msra.mxu0 0.0
    %561 = vmatprep.subr.mxu0 0.0
    %562 = vmatpush1.xpose.msra.mxu0 0.0
    %563 = vmatprep.subr.mxu0 0.0
    %564 = vmatpush1.xpose.msra.mxu0 0.0
    %565 = vmatprep.subr.mxu0 0.0
    %566 = vmatpush1.xpose.msra.mxu0 0.0
    %567 = vmatprep.subr.mxu0 0.0
    %568 = vmatpush1.xpose.msra.mxu0 0.0
    %569 = vmatprep.mubr.f32.mxu0 0.0
    %570 = vmatmul.mubr.f32.gmra.mrb[0].mxu0 %v496
    %v571 = vpop.f32.mrb[0].mxu0
    %v572 = vadd.f32 %v64, %v571
    %v573 = vpop.f32.mrb[0].mxu0
    %574 = vmatprep.mubr.f32.mxu0 0.0
    %575 = vmatmul.mubr.f32.gmra.mrb[0].mxu0 %v499
    %v576 = vpop.f32.mrb[0].mxu0
    %v577 = vadd.f32 %v65, %v576
    %v578 = vpop.f32.mrb[0].mxu0
    %579 = vdwg.mxu0
    %vm580 = vcmask 130048
    %v581 = vsel %vm580, %v305, -inf
    %582 = vmax.xlane.f32.xlu0 %v581
    %v583 = vpop.xlane.xlu0 %582
    %v584 = vsel %vm580, %v310, -inf
    %585 = vmax.xlane.f32.xlu0 %v584
    %v586 = vpop.xlane.xlu0 %585
    %v587 = vsel %vm580, %v394, -inf
    %588 = vmax.xlane.f32.xlu0 %v587
    %v589 = vpop.xlane.xlu0 %588
    %v590 = vsel %vm580, %v399, -inf
    %591 = vmax.xlane.f32.xlu0 %v590
    %v592 = vpop.xlane.xlu0 %591
    %v593 = vsel %vm580, %v483, -inf
    %594 = vmax.xlane.f32.xlu0 %v593
    %v595 = vpop.xlane.xlu0 %594
    %v596 = vsel %vm580, %v488, -inf
    %597 = vmax.xlane.f32.xlu0 %v596
    %v598 = vpop.xlane.xlu0 %597
    %v599 = vsel %vm580, %v572, -inf
    %600 = vmax.xlane.f32.xlu0 %v599
    %v601 = vpop.xlane.xlu0 %600
    %v602 = vsel %vm580, %v577, -inf
    %603 = vmax.xlane.f32.xlu0 %v602
    %v604 = vpop.xlane.xlu0 %603
    %v605 = vsub.f32 %v305, %v583
    %v606 = vsub.f32 %v310, %v586
    %v607 = vsub.f32 %v394, %v589
    %v608 = vsub.f32 %v399, %v592
    %v609 = vsub.f32 %v483, %v595
    %v610 = vsub.f32 %v488, %v598
    %v611 = vsub.f32 %v572, %v601
    %v612 = vsub.f32 %v577, %v604
    %v613 = vmul.f32 %v605, 1.442695
    %v614 = vpow.pop %v613
    %v615 = vmul.f32 %v606, 1.442695
    %v616 = vpow.pop %v615
    %v617 = vmul.f32 %v607, 1.442695
    %v618 = vpow.pop %v617
    %v619 = vmul.f32 %v608, 1.442695
    %v620 = vpow.pop %v619
    %v621 = vmul.f32 %v609, 1.442695
    %v622 = vpow.pop %v621
    %v623 = vmul.f32 %v610, 1.442695
    %v624 = vpow.pop %v623
    %v625 = vmul.f32 %v611, 1.442695
    %v626 = vpow.pop %v625
    %v627 = vmul.f32 %v612, 1.442695
    %v628 = vpow.pop %v627
    %v629 = vsel %vm580, %v614, 0.0
    %630 = vadd.xlane.f32.xlu0 %v629
    %v631 = vpop.xlane.xlu0 %630
    %v632 = vsel %vm580, %v616, 0.0
    %633 = vadd.xlane.f32.xlu0 %v632
    %v634 = vpop.xlane.xlu0 %633
    %v635 = vsel %vm580, %v618, 0.0
    %636 = vadd.xlane.f32.xlu0 %v635
    %v637 = vpop.xlane.xlu0 %636
    %v638 = vsel %vm580, %v620, 0.0
    %639 = vadd.xlane.f32.xlu0 %v638
    %v640 = vpop.xlane.xlu0 %639
    %v641 = vsel %vm580, %v622, 0.0
    %642 = vadd.xlane.f32.xlu0 %v641
    %v643 = vpop.xlane.xlu0 %642
    %v644 = vsel %vm580, %v624, 0.0
    %645 = vadd.xlane.f32.xlu0 %v644
    %v646 = vpop.xlane.xlu0 %645
    %v647 = vsel %vm580, %v626, 0.0
    %648 = vadd.xlane.f32.xlu0 %v647
    %v649 = vpop.xlane.xlu0 %648
    %v650 = vsel %vm580, %v628, 0.0
    %651 = vadd.xlane.f32.xlu0 %v650
    %v652 = vpop.xlane.xlu0 %651
    %v653 = vrcp.pop %v631
    %v654 = vmul.f32 %v614, %v653
    %v655 = vrcp.pop %v634
    %v656 = vmul.f32 %v616, %v655
    %v657 = vrcp.pop %v637
    %v658 = vmul.f32 %v618, %v657
    %v659 = vrcp.pop %v640
    %v660 = vmul.f32 %v620, %v659
    %v661 = vrcp.pop %v643
    %v662 = vmul.f32 %v622, %v661
    %v663 = vrcp.pop %v646
    %v664 = vmul.f32 %v624, %v663
    %v665 = vrcp.pop %v649
    %v666 = vmul.f32 %v626, %v665
    %v667 = vrcp.pop %v652
    %v668 = vmul.f32 %v628, %v667
    %669 = vrot.lane.b32.xlu0 %v163, 64
    %v670 = vpop.permute.xlu0 %669
    %671 = vrot.lane.b32.xlu0 %v169, 64
    %v672 = vpop.permute.xlu0 %671
    %v676 = vsel %vm580, %v654, 0
    %v679 = vsel %vm580, %v656, 0
    %681 = vmatprep.subr.mxu0 0.0
    %682 = vmatpush1.msra.mxu0 %v670
    %683 = vmatprep.subr.mxu0 0.0
    %684 = vmatpush1.msra.mxu0 %v672
    %685 = vmatprep.subr.mxu0 0.0
    %686 = vmatpush1.msra.mxu0 0.0
    %687 = vmatprep.subr.mxu0 0.0
    %688 = vmatpush1.msra.mxu0 0.0
    %689 = vmatprep.subr.mxu0 0.0
    %690 = vmatpush1.msra.mxu0 0.0
    %691 = vmatprep.subr.mxu0 0.0
    %692 = vmatpush1.msra.mxu0 0.0
    %693 = vmatprep.subr.mxu0 0.0
    %694 = vmatpush1.msra.mxu0 0.0
    %695 = vmatprep.subr.mxu0 0.0
    %696 = vmatpush1.msra.mxu0 0.0
    %697 = vmatprep.subr.mxu0 0.0
    %698 = vmatpush1.msra.mxu0 0.0
    %699 = vmatprep.subr.mxu0 0.0
    %700 = vmatpush1.msra.mxu0 0.0
    %701 = vmatprep.subr.mxu0 0.0
    %702 = vmatpush1.msra.mxu0 0.0
    %703 = vmatprep.subr.mxu0 0.0
    %704 = vmatpush1.msra.mxu0 0.0
    %705 = vmatprep.subr.mxu0 0.0
    %706 = vmatpush1.msra.mxu0 0.0
    %707 = vmatprep.subr.mxu0 0.0
    %708 = vmatpush1.msra.mxu0 0.0
    %709 = vmatprep.subr.mxu0 0.0
    %710 = vmatpush1.msra.mxu0 0.0
    %711 = vmatprep.subr.mxu0 0.0
    %712 = vmatpush1.msra.mxu0 0.0
    %713 = vmatprep.subr.mxu0 0.0
    %714 = vmatpush1.msra.mxu0 0.0
    %715 = vmatprep.subr.mxu0 0.0
    %716 = vmatpush1.msra.mxu0 0.0
    %717 = vmatprep.subr.mxu0 0.0
    %718 = vmatpush1.msra.mxu0 0.0
    %719 = vmatprep.subr.mxu0 0.0
    %720 = vmatpush1.msra.mxu0 0.0
    %721 = vmatprep.subr.mxu0 0.0
    %722 = vmatpush1.msra.mxu0 0.0
    %723 = vmatprep.subr.mxu0 0.0
    %724 = vmatpush1.msra.mxu0 0.0
    %725 = vmatprep.subr.mxu0 0.0
    %726 = vmatpush1.msra.mxu0 0.0
    %727 = vmatprep.subr.mxu0 0.0
    %728 = vmatpush1.msra.mxu0 0.0
    %729 = vmatprep.subr.mxu0 0.0
    %730 = vmatpush1.msra.mxu0 0.0
    %731 = vmatprep.subr.mxu0 0.0
    %732 = vmatpush1.msra.mxu0 0.0
    %733 = vmatprep.subr.mxu0 0.0
    %734 = vmatpush1.msra.mxu0 0.0
    %735 = vmatprep.subr.mxu0 0.0
    %736 = vmatpush1.msra.mxu0 0.0
    %737 = vmatprep.subr.mxu0 0.0
    %738 = vmatpush1.msra.mxu0 0.0
    %739 = vmatprep.subr.mxu0 0.0
    %740 = vmatpush1.msra.mxu0 0.0
    %741 = vmatprep.subr.mxu0 0.0
    %742 = vmatpush1.msra.mxu0 0.0
    %743 = vmatprep.subr.mxu0 0.0
    %744 = vmatpush1.msra.mxu0 0.0
    %745 = vmatprep.mubr.f32.mxu0 0.0
    %746 = vmatmul.mubr.f32.gmra.mrb[0].mxu0 %v676
    %v747 = vpop.f32.mrb[0].mxu0
    %v748 = vadd.f32 0.0, %v747
    %v749 = vpop.f32.mrb[0].mxu0
    %750 = vmatprep.mubr.f32.mxu0 0.0
    %751 = vmatmul.mubr.f32.gmra.mrb[0].mxu0 %v679
    %v752 = vpop.f32.mrb[0].mxu0
    %v753 = vadd.f32 0.0, %v752
    %v754 = vpop.f32.mrb[0].mxu0
    %755 = vdwg.mxu0
    %756 = vrot.lane.b32.xlu0 %v176, 64
    %v757 = vpop.permute.xlu0 %756
    %758 = vrot.lane.b32.xlu0 %v178, 64
    %v759 = vpop.permute.xlu0 %758
    %v763 = vsel %vm580, %v658, 0
    %v766 = vsel %vm580, %v660, 0
    %768 = vmatprep.subr.mxu0 0.0
    %769 = vmatpush1.msra.mxu0 %v757
    %770 = vmatprep.subr.mxu0 0.0
    %771 = vmatpush1.msra.mxu0 %v759
    %772 = vmatprep.subr.mxu0 0.0
    %773 = vmatpush1.msra.mxu0 0.0
    %774 = vmatprep.subr.mxu0 0.0
    %775 = vmatpush1.msra.mxu0 0.0
    %776 = vmatprep.subr.mxu0 0.0
    %777 = vmatpush1.msra.mxu0 0.0
    %778 = vmatprep.subr.mxu0 0.0
    %779 = vmatpush1.msra.mxu0 0.0
    %780 = vmatprep.subr.mxu0 0.0
    %781 = vmatpush1.msra.mxu0 0.0
    %782 = vmatprep.subr.mxu0 0.0
    %783 = vmatpush1.msra.mxu0 0.0
    %784 = vmatprep.subr.mxu0 0.0
    %785 = vmatpush1.msra.mxu0 0.0
    %786 = vmatprep.subr.mxu0 0.0
    %787 = vmatpush1.msra.mxu0 0.0
    %788 = vmatprep.subr.mxu0 0.0
    %789 = vmatpush1.msra.mxu0 0.0
    %790 = vmatprep.subr.mxu0 0.0
    %791 = vmatpush1.msra.mxu0 0.0
    %792 = vmatprep.subr.mxu0 0.0
    %793 = vmatpush1.msra.mxu0 0.0
    %794 = vmatprep.subr.mxu0 0.0
    %795 = vmatpush1.msra.mxu0 0.0
    %796 = vmatprep.subr.mxu0 0.0
    %797 = vmatpush1.msra.mxu0 0.0
    %798 = vmatprep.subr.mxu0 0.0
    %799 = vmatpush1.msra.mxu0 0.0
    %800 = vmatprep.subr.mxu0 0.0
    %801 = vmatpush1.msra.mxu0 0.0
    %802 = vmatprep.subr.mxu0 0.0
    %803 = vmatpush1.msra.mxu0 0.0
    %804 = vmatprep.subr.mxu0 0.0
    %805 = vmatpush1.msra.mxu0 0.0
    %806 = vmatprep.subr.mxu0 0.0
    %807 = vmatpush1.msra.mxu0 0.0
    %808 = vmatprep.subr.mxu0 0.0
    %809 = vmatpush1.msra.mxu0 0.0
    %810 = vmatprep.subr.mxu0 0.0
    %811 = vmatpush1.msra.mxu0 0.0
    %812 = vmatprep.subr.mxu0 0.0
    %813 = vmatpush1.msra.mxu0 0.0
    %814 = vmatprep.subr.mxu0 0.0
    %815 = vmatpush1.msra.mxu0 0.0
    %816 = vmatprep.subr.mxu0 0.0
    %817 = vmatpush1.msra.mxu0 0.0
    %818 = vmatprep.subr.mxu0 0.0
    %819 = vmatpush1.msra.mxu0 0.0
    %820 = vmatprep.subr.mxu0 0.0
    %821 = vmatpush1.msra.mxu0 0.0
    %822 = vmatprep.subr.mxu0 0.0
    %823 = vmatpush1.msra.mxu0 0.0
    %824 = vmatprep.subr.mxu0 0.0
    %825 = vmatpush1.msra.mxu0 0.0
    %826 = vmatprep.subr.mxu0 0.0
    %827 = vmatpush1.msra.mxu0 0.0
    %828 = vmatprep.subr.mxu0 0.0
    %829 = vmatpush1.msra.mxu0 0.0
    %830 = vmatprep.subr.mxu0 0.0
    %831 = vmatpush1.msra.mxu0 0.0
    %832 = vmatprep.mubr.f32.mxu0 0.0
    %833 = vmatmul.mubr.f32.gmra.mrb[0].mxu0 %v763
    %v834 = vpop.f32.mrb[0].mxu0
    %v835 = vadd.f32 0.0, %v834
    %v836 = vpop.f32.mrb[0].mxu0
    %837 = vmatprep.mubr.f32.mxu0 0.0
    %838 = vmatmul.mubr.f32.gmra.mrb[0].mxu0 %v766
    %v839 = vpop.f32.mrb[0].mxu0
    %v840 = vadd.f32 0.0, %v839
    %v841 = vpop.f32.mrb[0].mxu0
    %842 = vdwg.mxu0
    %843 = vrot.lane.b32.xlu0 %v182, 64
    %v844 = vpop.permute.xlu0 %843
    %845 = vrot.lane.b32.xlu0 %v184, 64
    %v846 = vpop.permute.xlu0 %845
    %v850 = vsel %vm580, %v662, 0
    %v853 = vsel %vm580, %v664, 0
    %855 = vmatprep.subr.mxu0 0.0
    %856 = vmatpush1.msra.mxu0 %v844
    %857 = vmatprep.subr.mxu0 0.0
    %858 = vmatpush1.msra.mxu0 %v846
    %859 = vmatprep.subr.mxu0 0.0
    %860 = vmatpush1.msra.mxu0 0.0
    %861 = vmatprep.subr.mxu0 0.0
    %862 = vmatpush1.msra.mxu0 0.0
    %863 = vmatprep.subr.mxu0 0.0
    %864 = vmatpush1.msra.mxu0 0.0
    %865 = vmatprep.subr.mxu0 0.0
    %866 = vmatpush1.msra.mxu0 0.0
    %867 = vmatprep.subr.mxu0 0.0
    %868 = vmatpush1.msra.mxu0 0.0
    %869 = vmatprep.subr.mxu0 0.0
    %870 = vmatpush1.msra.mxu0 0.0
    %871 = vmatprep.subr.mxu0 0.0
    %872 = vmatpush1.msra.mxu0 0.0
    %873 = vmatprep.subr.mxu0 0.0
    %874 = vmatpush1.msra.mxu0 0.0
    %875 = vmatprep.subr.mxu0 0.0
    %876 = vmatpush1.msra.mxu0 0.0
    %877 = vmatprep.subr.mxu0 0.0
    %878 = vmatpush1.msra.mxu0 0.0
    %879 = vmatprep.subr.mxu0 0.0
    %880 = vmatpush1.msra.mxu0 0.0
    %881 = vmatprep.subr.mxu0 0.0
    %882 = vmatpush1.msra.mxu0 0.0
    %883 = vmatprep.subr.mxu0 0.0
    %884 = vmatpush1.msra.mxu0 0.0
    %885 = vmatprep.subr.mxu0 0.0
    %886 = vmatpush1.msra.mxu0 0.0
    %887 = vmatprep.subr.mxu0 0.0
    %888 = vmatpush1.msra.mxu0 0.0
    %889 = vmatprep.subr.mxu0 0.0
    %890 = vmatpush1.msra.mxu0 0.0
    %891 = vmatprep.subr.mxu0 0.0
    %892 = vmatpush1.msra.mxu0 0.0
    %893 = vmatprep.subr.mxu0 0.0
    %894 = vmatpush1.msra.mxu0 0.0
    %895 = vmatprep.subr.mxu0 0.0
    %896 = vmatpush1.msra.mxu0 0.0
    %897 = vmatprep.subr.mxu0 0.0
    %898 = vmatpush1.msra.mxu0 0.0
    %899 = vmatprep.subr.mxu0 0.0
    %900 = vmatpush1.msra.mxu0 0.0
    %901 = vmatprep.subr.mxu0 0.0
    %902 = vmatpush1.msra.mxu0 0.0
    %903 = vmatprep.subr.mxu0 0.0
    %904 = vmatpush1.msra.mxu0 0.0
    %905 = vmatprep.subr.mxu0 0.0
    %906 = vmatpush1.msra.mxu0 0.0
    %907 = vmatprep.subr.mxu0 0.0
    %908 = vmatpush1.msra.mxu0 0.0
    %909 = vmatprep.subr.mxu0 0.0
    %910 = vmatpush1.msra.mxu0 0.0
    %911 = vmatprep.subr.mxu0 0.0
    %912 = vmatpush1.msra.mxu0 0.0
    %913 = vmatprep.subr.mxu0 0.0
    %914 = vmatpush1.msra.mxu0 0.0
    %915 = vmatprep.subr.mxu0 0.0
    %916 = vmatpush1.msra.mxu0 0.0
    %917 = vmatprep.subr.mxu0 0.0
    %918 = vmatpush1.msra.mxu0 0.0
    %919 = vmatprep.mubr.f32.mxu0 0.0
    %920 = vmatmul.mubr.f32.gmra.mrb[0].mxu0 %v850
    %v921 = vpop.f32.mrb[0].mxu0
    %v922 = vadd.f32 0.0, %v921
    %v923 = vpop.f32.mrb[0].mxu0
    %924 = vmatprep.mubr.f32.mxu0 0.0
    %925 = vmatmul.mubr.f32.gmra.mrb[0].mxu0 %v853
    %v926 = vpop.f32.mrb[0].mxu0
    %v927 = vadd.f32 0.0, %v926
    %v928 = vpop.f32.mrb[0].mxu0
    %929 = vdwg.mxu0
    %930 = vrot.lane.b32.xlu0 %v188, 64
    %v931 = vpop.permute.xlu0 %930
    %932 = vrot.lane.b32.xlu0 %v190, 64
    %v933 = vpop.permute.xlu0 %932
    %v937 = vsel %vm580, %v666, 0
    %v940 = vsel %vm580, %v668, 0
    %942 = vmatprep.subr.mxu0 0.0
    %943 = vmatpush1.msra.mxu0 %v931
    %944 = vmatprep.subr.mxu0 0.0
    %945 = vmatpush1.msra.mxu0 %v933
    %946 = vmatprep.subr.mxu0 0.0
    %947 = vmatpush1.msra.mxu0 0.0
    %948 = vmatprep.subr.mxu0 0.0
    %949 = vmatpush1.msra.mxu0 0.0
    %950 = vmatprep.subr.mxu0 0.0
    %951 = vmatpush1.msra.mxu0 0.0
    %952 = vmatprep.subr.mxu0 0.0
    %953 = vmatpush1.msra.mxu0 0.0
    %954 = vmatprep.subr.mxu0 0.0
    %955 = vmatpush1.msra.mxu0 0.0
    %956 = vmatprep.subr.mxu0 0.0
    %957 = vmatpush1.msra.mxu0 0.0
    %958 = vmatprep.subr.mxu0 0.0
    %959 = vmatpush1.msra.mxu0 0.0
    %960 = vmatprep.subr.mxu0 0.0
    %961 = vmatpush1.msra.mxu0 0.0
    %962 = vmatprep.subr.mxu0 0.0
    %963 = vmatpush1.msra.mxu0 0.0
    %964 = vmatprep.subr.mxu0 0.0
    %965 = vmatpush1.msra.mxu0 0.0
    %966 = vmatprep.subr.mxu0 0.0
    %967 = vmatpush1.msra.mxu0 0.0
    %968 = vmatprep.subr.mxu0 0.0
    %969 = vmatpush1.msra.mxu0 0.0
    %970 = vmatprep.subr.mxu0 0.0
    %971 = vmatpush1.msra.mxu0 0.0
    %972 = vmatprep.subr.mxu0 0.0
    %973 = vmatpush1.msra.mxu0 0.0
    %974 = vmatprep.subr.mxu0 0.0
    %975 = vmatpush1.msra.mxu0 0.0
    %976 = vmatprep.subr.mxu0 0.0
    %977 = vmatpush1.msra.mxu0 0.0
    %978 = vmatprep.subr.mxu0 0.0
    %979 = vmatpush1.msra.mxu0 0.0
    %980 = vmatprep.subr.mxu0 0.0
    %981 = vmatpush1.msra.mxu0 0.0
    %982 = vmatprep.subr.mxu0 0.0
    %983 = vmatpush1.msra.mxu0 0.0
    %984 = vmatprep.subr.mxu0 0.0
    %985 = vmatpush1.msra.mxu0 0.0
    %986 = vmatprep.subr.mxu0 0.0
    %987 = vmatpush1.msra.mxu0 0.0
    %988 = vmatprep.subr.mxu0 0.0
    %989 = vmatpush1.msra.mxu0 0.0
    %990 = vmatprep.subr.mxu0 0.0
    %991 = vmatpush1.msra.mxu0 0.0
    %992 = vmatprep.subr.mxu0 0.0
    %993 = vmatpush1.msra.mxu0 0.0
    %994 = vmatprep.subr.mxu0 0.0
    %995 = vmatpush1.msra.mxu0 0.0
    %996 = vmatprep.subr.mxu0 0.0
    %997 = vmatpush1.msra.mxu0 0.0
    %998 = vmatprep.subr.mxu0 0.0
    %999 = vmatpush1.msra.mxu0 0.0
    %1000 = vmatprep.subr.mxu0 0.0
    %1001 = vmatpush1.msra.mxu0 0.0
    %1002 = vmatprep.subr.mxu0 0.0
    %1003 = vmatpush1.msra.mxu0 0.0
    %1004 = vmatprep.subr.mxu0 0.0
    %1005 = vmatpush1.msra.mxu0 0.0
    %1006 = vmatprep.mubr.f32.mxu0 0.0
    %1007 = vmatmul.mubr.f32.gmra.mrb[0].mxu0 %v937
    %v1008 = vpop.f32.mrb[0].mxu0
    %v1009 = vadd.f32 0.0, %v1008
    %v1010 = vpop.f32.mrb[0].mxu0
    %1011 = vmatprep.mubr.f32.mxu0 0.0
    %1012 = vmatmul.mubr.f32.gmra.mrb[0].mxu0 %v940
    %v1013 = vpop.f32.mrb[0].mxu0
    %v1014 = vadd.f32 0.0, %v1013
    %v1015 = vpop.f32.mrb[0].mxu0
    %1016 = vdwg.mxu0
    %1019 = vrot.lane.b32.xlu0 %v835, 8
    %v1020 = vpop.permute.xlu0 %1019
    %1021 = vrot.lane.b32.xlu0 %v840, 8
    %v1022 = vpop.permute.xlu0 %1021
    %1027 = vrot.lane.b32.xlu0 %v922, 16
    %v1028 = vpop.permute.xlu0 %1027
    %1029 = vrot.lane.b32.xlu0 %v927, 16
    %v1030 = vpop.permute.xlu0 %1029
    %1035 = vrot.lane.b32.xlu0 %v1009, 24
    %v1036 = vpop.permute.xlu0 %1035
    %1037 = vrot.lane.b32.xlu0 %v1014, 24
    %v1038 = vpop.permute.xlu0 %1037
    %v1041 = vsel %vm227, %v748, %v1020
    %v1042 = vsel %vm227, %v753, %v1022
    %v1043 = vsel %vm580, %v1041, %v1028
    %v1044 = vsel %vm580, %v1042, %v1030
    %vm1045 = vcmask 195584
    %v1046 = vsel %vm1045, %v1043, %v1036
    %v1047 = vsel %vm1045, %v1044, %v1038
    %v1048 = vld [vmem:[%s5] sm:$0xff]
    %v1049 = vld [vmem:[%s5 + $0x8] sm:$0xff]
    %v1050 = vld [vmem:[%s5 + $0x10] sm:$0xff]
    %v1051 = vld [vmem:[%s5 + $0x18] sm:$0xff]
    %v1052 = vlaneseq
    %v1053 = vshrl.u32 %v1052, 7
    %v1054 = vsub.s32 0, %v1053
    %v1055 = vrot.slane %v68, %v1054
    %v1057 = vsel %vm89, %v1046, 0
    %v1060 = vsel %vm89, %v1047, 0
    %1062 = vmatprep.subr.mxu0 0.0
    %1063 = vmatpush1.msra.mxu0 %v1048
    %1064 = vmatprep.subr.mxu0 0.0
    %1065 = vmatpush1.msra.mxu0 %v1049
    %1066 = vmatprep.subr.mxu0 0.0
    %1067 = vmatpush1.msra.mxu0 %v1050
    %1068 = vmatprep.subr.mxu0 0.0
    %1069 = vmatpush1.msra.mxu0 %v1051
    %1070 = vmatprep.subr.mxu0 0.0
    %1071 = vmatpush1.msra.mxu0 0.0
    %1072 = vmatprep.subr.mxu0 0.0
    %1073 = vmatpush1.msra.mxu0 0.0
    %1074 = vmatprep.subr.mxu0 0.0
    %1075 = vmatpush1.msra.mxu0 0.0
    %1076 = vmatprep.subr.mxu0 0.0
    %1077 = vmatpush1.msra.mxu0 0.0
    %1078 = vmatprep.subr.mxu0 0.0
    %1079 = vmatpush1.msra.mxu0 0.0
    %1080 = vmatprep.subr.mxu0 0.0
    %1081 = vmatpush1.msra.mxu0 0.0
    %1082 = vmatprep.subr.mxu0 0.0
    %1083 = vmatpush1.msra.mxu0 0.0
    %1084 = vmatprep.subr.mxu0 0.0
    %1085 = vmatpush1.msra.mxu0 0.0
    %1086 = vmatprep.subr.mxu0 0.0
    %1087 = vmatpush1.msra.mxu0 0.0
    %1088 = vmatprep.subr.mxu0 0.0
    %1089 = vmatpush1.msra.mxu0 0.0
    %1090 = vmatprep.subr.mxu0 0.0
    %1091 = vmatpush1.msra.mxu0 0.0
    %1092 = vmatprep.subr.mxu0 0.0
    %1093 = vmatpush1.msra.mxu0 0.0
    %1094 = vmatprep.subr.mxu0 0.0
    %1095 = vmatpush1.msra.mxu0 0.0
    %1096 = vmatprep.subr.mxu0 0.0
    %1097 = vmatpush1.msra.mxu0 0.0
    %1098 = vmatprep.subr.mxu0 0.0
    %1099 = vmatpush1.msra.mxu0 0.0
    %1100 = vmatprep.subr.mxu0 0.0
    %1101 = vmatpush1.msra.mxu0 0.0
    %1102 = vmatprep.subr.mxu0 0.0
    %1103 = vmatpush1.msra.mxu0 0.0
    %1104 = vmatprep.subr.mxu0 0.0
    %1105 = vmatpush1.msra.mxu0 0.0
    %1106 = vmatprep.subr.mxu0 0.0
    %1107 = vmatpush1.msra.mxu0 0.0
    %1108 = vmatprep.subr.mxu0 0.0
    %1109 = vmatpush1.msra.mxu0 0.0
    %1110 = vmatprep.subr.mxu0 0.0
    %1111 = vmatpush1.msra.mxu0 0.0
    %1112 = vmatprep.subr.mxu0 0.0
    %1113 = vmatpush1.msra.mxu0 0.0
    %1114 = vmatprep.subr.mxu0 0.0
    %1115 = vmatpush1.msra.mxu0 0.0
    %1116 = vmatprep.subr.mxu0 0.0
    %1117 = vmatpush1.msra.mxu0 0.0
    %1118 = vmatprep.subr.mxu0 0.0
    %1119 = vmatpush1.msra.mxu0 0.0
    %1120 = vmatprep.subr.mxu0 0.0
    %1121 = vmatpush1.msra.mxu0 0.0
    %1122 = vmatprep.subr.mxu0 0.0
    %1123 = vmatpush1.msra.mxu0 0.0
    %1124 = vmatprep.subr.mxu0 0.0
    %1125 = vmatpush1.msra.mxu0 0.0
    %1126 = vmatprep.mubr.f32.mxu0 0.0
    %1127 = vmatmul.mubr.f32.gmra.mrb[0].mxu0 %v1057
    %v1128 = vpop.f32.mrb[0].mxu0
    %v1129 = vadd.f32 %v1055, %v1128
    %v1130 = vpop.f32.mrb[0].mxu0
    %1131 = vmatprep.mubr.f32.mxu0 0.0
    %1132 = vmatmul.mubr.f32.gmra.mrb[0].mxu0 %v1060
    %v1133 = vpop.f32.mrb[0].mxu0
    %v1134 = vadd.f32 %v1055, %v1133
    %v1135 = vpop.f32.mrb[0].mxu0
    %1136 = vdwg.mxu0
    %v1137 = vadd.f32 %v62, %v1129
    %v1138 = vadd.f32 %v63, %v1134
    %1141 = vrot.lane.b32.xlu0 %v221, 32
    %v1142 = vpop.permute.xlu0 %1141
    %1143 = vrot.lane.b32.xlu0 %v222, 32
    %v1144 = vpop.permute.xlu0 %1143
    %v1147 = vadd.f32 %v1137, %v1142
    %v1148 = vadd.f32 %v1138, %v1144
    %v1149 = vsel %vm89, %v1147, 0.0
    %1150 = vadd.xlane.f32.xlu0 %v1149
    %v1151 = vpop.xlane.xlu0 %1150
    %v1152 = vsel %vm89, %v1148, 0.0
    %1153 = vadd.xlane.f32.xlu0 %v1152
    %v1154 = vpop.xlane.xlu0 %1153
    %v1155 = vrcp.pop 32.0
    %v1156 = vmul.f32 %v1151, %v1155
    %v1157 = vmul.f32 %v1154, %v1155
    %v1158 = vsub.f32 %v1147, %v1156
    %v1159 = vsub.f32 %v1148, %v1157
    %v1160 = vmul.f32 %v1158, %v1158
    %v1161 = vmul.f32 %v1159, %v1159
    %v1162 = vsel %vm89, %v1160, 0.0
    %1163 = vadd.xlane.f32.xlu0 %v1162
    %v1164 = vpop.xlane.xlu0 %1163
    %v1165 = vsel %vm89, %v1161, 0.0
    %1166 = vadd.xlane.f32.xlu0 %v1165
    %v1167 = vpop.xlane.xlu0 %1166
    %v1168 = vmul.f32 %v1164, %v1155
    %v1169 = vmul.f32 %v1167, %v1155
    %v1170 = vadd.f32 %v1168, 1e-06
    %v1171 = vadd.f32 %v1169, 1e-06
    %v1172 = vrsqrt.pop %v1170
    %v1173 = vrsqrt.pop %v1171
    %v1174 = vmul.f32 %v1158, %v1172
    %v1175 = vmul.f32 %v1159, %v1173
    %v1176 = vlaneseq
    %v1177 = vshrl.u32 %v1176, 7
    %v1178 = vsub.s32 2, %v1177
    %v1179 = vrot.slane %v68, %v1178
    %v1180 = vmul.f32 %v1174, %v1179
    %v1181 = vmul.f32 %v1175, %v1179
    %v1182 = vlaneseq
    %v1183 = vshrl.u32 %v1182, 7
    %v1184 = vsub.s32 3, %v1183
    %v1185 = vrot.slane %v68, %v1184
    %v1186 = vadd.f32 %v1180, %v1185
    %v1187 = vadd.f32 %v1181, %v1185
    %1189 = vset.pattern.permute.xlu0 0
    %1190 = vperm.xlu0 %1189, %v66
    %v1191 = vpop.permute.xlu0 %1190
    %1194 = vset.pattern.permute.xlu0 0
    %1195 = vperm.xlu0 %1194, %v67
    %v1196 = vpop.permute.xlu0 %1195
    %v1198 = vmul.f32 %v1186, %v1191
    %v1199 = vmul.f32 %v1187, %v1196
    %v1200 = vld [vmem:[%s6] sm:$0xff]
    %v1201 = vld [vmem:[%s6 + $0x8] sm:$0xff]
    %v1202 = vld [vmem:[%s6 + $0x10] sm:$0xff]
    %v1203 = vld [vmem:[%s6 + $0x18] sm:$0xff]
    %v1204 = vld [vmem:[%s7] sm:$0x1]
    %v1206 = vlaneseq
    %v1207 = vshrl.u32 %v1206, 7
    %v1208 = vsub.s32 0, %v1207
    %v1209 = vrot.slane %v1204, %v1208
    %v1212 = vsel %vm89, %v1198, 0
    %v1215 = vsel %vm89, %v1199, 0
    %1217 = vmatprep.subr.mxu0 0.0
    %1218 = vmatpush1.msra.mxu0 %v1200
    %1219 = vmatprep.subr.mxu0 0.0
    %1220 = vmatpush1.msra.mxu0 %v1201
    %1221 = vmatprep.subr.mxu0 0.0
    %1222 = vmatpush1.msra.mxu0 %v1202
    %1223 = vmatprep.subr.mxu0 0.0
    %1224 = vmatpush1.msra.mxu0 %v1203
    %1225 = vmatprep.subr.mxu0 0.0
    %1226 = vmatpush1.msra.mxu0 0.0
    %1227 = vmatprep.subr.mxu0 0.0
    %1228 = vmatpush1.msra.mxu0 0.0
    %1229 = vmatprep.subr.mxu0 0.0
    %1230 = vmatpush1.msra.mxu0 0.0
    %1231 = vmatprep.subr.mxu0 0.0
    %1232 = vmatpush1.msra.mxu0 0.0
    %1233 = vmatprep.subr.mxu0 0.0
    %1234 = vmatpush1.msra.mxu0 0.0
    %1235 = vmatprep.subr.mxu0 0.0
    %1236 = vmatpush1.msra.mxu0 0.0
    %1237 = vmatprep.subr.mxu0 0.0
    %1238 = vmatpush1.msra.mxu0 0.0
    %1239 = vmatprep.subr.mxu0 0.0
    %1240 = vmatpush1.msra.mxu0 0.0
    %1241 = vmatprep.subr.mxu0 0.0
    %1242 = vmatpush1.msra.mxu0 0.0
    %1243 = vmatprep.subr.mxu0 0.0
    %1244 = vmatpush1.msra.mxu0 0.0
    %1245 = vmatprep.subr.mxu0 0.0
    %1246 = vmatpush1.msra.mxu0 0.0
    %1247 = vmatprep.subr.mxu0 0.0
    %1248 = vmatpush1.msra.mxu0 0.0
    %1249 = vmatprep.subr.mxu0 0.0
    %1250 = vmatpush1.msra.mxu0 0.0
    %1251 = vmatprep.subr.mxu0 0.0
    %1252 = vmatpush1.msra.mxu0 0.0
    %1253 = vmatprep.subr.mxu0 0.0
    %1254 = vmatpush1.msra.mxu0 0.0
    %1255 = vmatprep.subr.mxu0 0.0
    %1256 = vmatpush1.msra.mxu0 0.0
    %1257 = vmatprep.subr.mxu0 0.0
    %1258 = vmatpush1.msra.mxu0 0.0
    %1259 = vmatprep.subr.mxu0 0.0
    %1260 = vmatpush1.msra.mxu0 0.0
    %1261 = vmatprep.subr.mxu0 0.0
    %1262 = vmatpush1.msra.mxu0 0.0
    %1263 = vmatprep.subr.mxu0 0.0
    %1264 = vmatpush1.msra.mxu0 0.0
    %1265 = vmatprep.subr.mxu0 0.0
    %1266 = vmatpush1.msra.mxu0 0.0
    %1267 = vmatprep.subr.mxu0 0.0
    %1268 = vmatpush1.msra.mxu0 0.0
    %1269 = vmatprep.subr.mxu0 0.0
    %1270 = vmatpush1.msra.mxu0 0.0
    %1271 = vmatprep.subr.mxu0 0.0
    %1272 = vmatpush1.msra.mxu0 0.0
    %1273 = vmatprep.subr.mxu0 0.0
    %1274 = vmatpush1.msra.mxu0 0.0
    %1275 = vmatprep.subr.mxu0 0.0
    %1276 = vmatpush1.msra.mxu0 0.0
    %1277 = vmatprep.subr.mxu0 0.0
    %1278 = vmatpush1.msra.mxu0 0.0
    %1279 = vmatprep.subr.mxu0 0.0
    %1280 = vmatpush1.msra.mxu0 0.0
    %1281 = vmatprep.mubr.f32.mxu0 0.0
    %1282 = vmatmul.mubr.f32.gmra.mrb[0].mxu0 %v1212
    %v1283 = vpop.f32.mrb[0].mxu0
    %v1284 = vadd.f32 %v1209, %v1283
    %v1285 = vpop.f32.mrb[0].mxu0
    %1286 = vmatprep.mubr.f32.mxu0 0.0
    %1287 = vmatmul.mubr.f32.gmra.mrb[0].mxu0 %v1215
    %v1288 = vpop.f32.mrb[0].mxu0
    %v1289 = vadd.f32 %v1209, %v1288
    %v1290 = vpop.f32.mrb[0].mxu0
    %1291 = vdwg.mxu0
    %v1292 = vmax.f32 %v1284, 0.0
    %v1293 = vmax.f32 %v1289, 0.0
    %v1294 = vxor.u32 %v1284, 2147483648
    %v1295 = vxor.u32 %v1289, 2147483648
    %v1296 = vmul.f32 %v1294, 1.442695
    %v1297 = vpow.pop %v1296
    %v1298 = vmul.f32 %v1295, 1.442695
    %v1299 = vpow.pop %v1298
    %v1300 = vadd.f32 %v1297, 1.0
    %v1301 = vadd.f32 %v1299, 1.0
    %v1302 = vrcp.pop %v1300
    %v1303 = vmul.f32 1.0, %v1302
    %v1304 = vrcp.pop %v1301
    %v1305 = vmul.f32 1.0, %v1304
    %1308 = vrot.lane.b32.xlu0 %v1284, 96
    %v1309 = vpop.permute.xlu0 %1308
    %1310 = vrot.lane.b32.xlu0 %v1289, 96
    %v1311 = vpop.permute.xlu0 %1310
    %v1314 = vmul.f32 %v1303, %v1309
    %v1315 = vmul.f32 %v1305, %v1311
    %v1316 = vld [vmem:[%s8] sm:$0xff]
    %v1317 = vld [vmem:[%s8 + $0x8] sm:$0xff]
    %v1318 = vld [vmem:[%s8 + $0x10] sm:$0xff]
    %v1319 = vld [vmem:[%s8 + $0x18] sm:$0xff]
    %v1320 = vld [vmem:[%s8 + $0x20] sm:$0xff]
    %v1321 = vld [vmem:[%s8 + $0x28] sm:$0xff]
    %v1322 = vld [vmem:[%s8 + $0x30] sm:$0xff]
    %v1323 = vld [vmem:[%s8 + $0x38] sm:$0xff]
    %v1324 = vlaneseq
    %v1325 = vshrl.u32 %v1324, 7
    %v1326 = vsub.s32 1, %v1325
    %v1327 = vrot.slane %v68, %v1326
    %vm1328 = vcmask 523264
    %v1330 = vsel %vm1328, %v1292, 0
    %v1333 = vsel %vm1328, %v1293, 0
    %1335 = vmatprep.subr.mxu0 0.0
    %1336 = vmatpush1.msra.mxu0 %v1316
    %1337 = vmatprep.subr.mxu0 0.0
    %1338 = vmatpush1.msra.mxu0 %v1317
    %1339 = vmatprep.subr.mxu0 0.0
    %1340 = vmatpush1.msra.mxu0 %v1318
    %1341 = vmatprep.subr.mxu0 0.0
    %1342 = vmatpush1.msra.mxu0 %v1319
    %1343 = vmatprep.subr.mxu0 0.0
    %1344 = vmatpush1.msra.mxu0 %v1320
    %1345 = vmatprep.subr.mxu0 0.0
    %1346 = vmatpush1.msra.mxu0 %v1321
    %1347 = vmatprep.subr.mxu0 0.0
    %1348 = vmatpush1.msra.mxu0 %v1322
    %1349 = vmatprep.subr.mxu0 0.0
    %1350 = vmatpush1.msra.mxu0 %v1323
    %1351 = vmatprep.subr.mxu0 0.0
    %1352 = vmatpush1.msra.mxu0 0.0
    %1353 = vmatprep.subr.mxu0 0.0
    %1354 = vmatpush1.msra.mxu0 0.0
    %1355 = vmatprep.subr.mxu0 0.0
    %1356 = vmatpush1.msra.mxu0 0.0
    %1357 = vmatprep.subr.mxu0 0.0
    %1358 = vmatpush1.msra.mxu0 0.0
    %1359 = vmatprep.subr.mxu0 0.0
    %1360 = vmatpush1.msra.mxu0 0.0
    %1361 = vmatprep.subr.mxu0 0.0
    %1362 = vmatpush1.msra.mxu0 0.0
    %1363 = vmatprep.subr.mxu0 0.0
    %1364 = vmatpush1.msra.mxu0 0.0
    %1365 = vmatprep.subr.mxu0 0.0
    %1366 = vmatpush1.msra.mxu0 0.0
    %1367 = vmatprep.subr.mxu0 0.0
    %1368 = vmatpush1.msra.mxu0 0.0
    %1369 = vmatprep.subr.mxu0 0.0
    %1370 = vmatpush1.msra.mxu0 0.0
    %1371 = vmatprep.subr.mxu0 0.0
    %1372 = vmatpush1.msra.mxu0 0.0
    %1373 = vmatprep.subr.mxu0 0.0
    %1374 = vmatpush1.msra.mxu0 0.0
    %1375 = vmatprep.subr.mxu0 0.0
    %1376 = vmatpush1.msra.mxu0 0.0
    %1377 = vmatprep.subr.mxu0 0.0
    %1378 = vmatpush1.msra.mxu0 0.0
    %1379 = vmatprep.subr.mxu0 0.0
    %1380 = vmatpush1.msra.mxu0 0.0
    %1381 = vmatprep.subr.mxu0 0.0
    %1382 = vmatpush1.msra.mxu0 0.0
    %1383 = vmatprep.subr.mxu0 0.0
    %1384 = vmatpush1.msra.mxu0 0.0
    %1385 = vmatprep.subr.mxu0 0.0
    %1386 = vmatpush1.msra.mxu0 0.0
    %1387 = vmatprep.subr.mxu0 0.0
    %1388 = vmatpush1.msra.mxu0 0.0
    %1389 = vmatprep.subr.mxu0 0.0
    %1390 = vmatpush1.msra.mxu0 0.0
    %1391 = vmatprep.subr.mxu0 0.0
    %1392 = vmatpush1.msra.mxu0 0.0
    %1393 = vmatprep.subr.mxu0 0.0
    %1394 = vmatpush1.msra.mxu0 0.0
    %1395 = vmatprep.subr.mxu0 0.0
    %1396 = vmatpush1.msra.mxu0 0.0
    %1397 = vmatprep.subr.mxu0 0.0
    %1398 = vmatpush1.msra.mxu0 0.0
    %1399 = vmatprep.mubr.f32.mxu0 0.0
    %1400 = vmatmul.mubr.f32.gmra.mrb[0].mxu0 %v1330
    %v1401 = vpop.f32.mrb[0].mxu0
    %v1402 = vadd.f32 %v1327, %v1401
    %v1403 = vpop.f32.mrb[0].mxu0
    %1404 = vmatprep.mubr.f32.mxu0 0.0
    %1405 = vmatmul.mubr.f32.gmra.mrb[0].mxu0 %v1333
    %v1406 = vpop.f32.mrb[0].mxu0
    %v1407 = vadd.f32 %v1327, %v1406
    %v1408 = vpop.f32.mrb[0].mxu0
    %1409 = vdwg.mxu0
    %v1410 = vadd.f32 %v1198, %v1402
    %v1411 = vadd.f32 %v1199, %v1407
    %1414 = vrot.lane.b32.xlu0 %v1314, 64
    %v1415 = vpop.permute.xlu0 %1414
    %1416 = vrot.lane.b32.xlu0 %v1315, 64
    %v1417 = vpop.permute.xlu0 %1416
    %v1420 = vadd.f32 %v1410, %v1415
    %v1421 = vadd.f32 %v1411, %v1417
    %v1422 = vsel %vm89, %v1420, 0.0
    %1423 = vadd.xlane.f32.xlu0 %v1422
    %v1424 = vpop.xlane.xlu0 %1423
    %v1425 = vsel %vm89, %v1421, 0.0
    %1426 = vadd.xlane.f32.xlu0 %v1425
    %v1427 = vpop.xlane.xlu0 %1426
    %v1428 = vmul.f32 %v1424, %v1155
    %v1429 = vmul.f32 %v1427, %v1155
    %v1430 = vsub.f32 %v1420, %v1428
    %v1431 = vsub.f32 %v1421, %v1429
    %v1432 = vmul.f32 %v1430, %v1430
    %v1433 = vmul.f32 %v1431, %v1431
    %v1434 = vsel %vm89, %v1432, 0.0
    %1435 = vadd.xlane.f32.xlu0 %v1434
    %v1436 = vpop.xlane.xlu0 %1435
    %v1437 = vsel %vm89, %v1433, 0.0
    %1438 = vadd.xlane.f32.xlu0 %v1437
    %v1439 = vpop.xlane.xlu0 %1438
    %v1440 = vmul.f32 %v1436, %v1155
    %v1441 = vmul.f32 %v1439, %v1155
    %v1442 = vadd.f32 %v1440, 1e-06
    %v1443 = vadd.f32 %v1441, 1e-06
    %v1444 = vrsqrt.pop %v1442
    %v1445 = vrsqrt.pop %v1443
    %v1446 = vmul.f32 %v1430, %v1444
    %v1447 = vmul.f32 %v1431, %v1445
    %v1448 = vlaneseq
    %v1449 = vshrl.u32 %v1448, 7
    %v1450 = vsub.s32 4, %v1449
    %v1451 = vrot.slane %v68, %v1450
    %v1452 = vmul.f32 %v1446, %v1451
    %v1453 = vmul.f32 %v1447, %v1451
    %v1454 = vlaneseq
    %v1455 = vshrl.u32 %v1454, 7
    %v1456 = vsub.s32 5, %v1455
    %v1457 = vrot.slane %v68, %v1456
    %v1458 = vadd.f32 %v1452, %v1457
    %v1459 = vadd.f32 %v1453, %v1457
    %v1460 = vmul.f32 %v1458, %v1191
    %v1461 = vmul.f32 %v1459, %v1196
    %1462 = vst.msk [vmem:[#allocation7] sm:$0xff] %vm89, %v1460
    %1463 = vst.msk [vmem:[#allocation7 + $0x8] sm:$0xff] %vm89, %v1461
    // Predicated region
    $region50: #{encoder_layer.1} parent=1 // pred_check
      _
    $region51: #{encoder_layer.1} parent=1 // pred_check_branch
      %1465 = sbr.rel (0) target = $region53
    $region52: #{encoder_layer.1} parent=1 // pred_region
      %s1467 = ssub.s32 256, 256
      %1468 = vsyncadd [#allocation4], %s1467
      %s1469 = sshll.u32 [#allocation7], 4
      %s1470 = int_to_ptr.vmem [resolvable:$true] %s1469
      %1475 = dma.vmem_to_hbm [thread:$0]  %s1470, 256, %s10, [#allocation4], 128, 128, 8
    $region53: #{encoder_layer.1} parent=1 // pred_fallthru
      _
    // Predicated region
    $region54: #{encoder_layer.1} parent=1 // pred_check
      _
    $region55: #{encoder_layer.1} parent=1 // pred_check_branch
      %1477 = sbr.rel (0) target = $region57
    $region56: #{encoder_layer.1} parent=1 // pred_region
      %1478 = dma.done [#allocation4], 256
    $region57: #{encoder_layer.1} parent=1 // pred_fallthru
      _
    %1479 = vsyncpa [#allocation3], 1
    %1480 = vsyncpa [#allocation6], 1
    %1481 = vsyncpa [#allocation4], 1

</llo_original>
